<compile_context>
chip_gen: v6e
topology: v6e:2x2x1
jax: 0.10.0
libtpu: 0.0.40
codegen_flags: <defaults>
</compile_context>

<pallas_src>
import jax
import jax.numpy as jnp
from jax import lax
from jax.experimental import pallas as pl
from jax.experimental.pallas import tpu as pltpu

_LANE = 128


def _attention_refinement_kernel(x_ref, w3_ref, s1_ref, b1_ref,
                                 w1_ref, s2_ref, b2_ref,
                                 o_ref, xpad_ref, fm_ref):
    # x_ref   : (1, H, W, Cin)    unpadded input tile for this batch item
    # w3_ref  : (9*Cin, Cp)       3x3 conv weight, taps (dy,dx) flattened into K
    # s1/b1   : (1, Cp)           folded BN1 scale / bias (zeros in padded lanes)
    # w1_ref  : (Cp, Cp)          1x1 conv weight (zero-padded)
    # s2/b2   : (1, Cp)           folded BN2 scale / bias (zeros in padded lanes)
    # o_ref   : (1, H*W, Cp)      lane-dense output slab (Cp % 128 == 0)
    # xpad_ref: (H+2, W+2, Cin)   VMEM scratch: zero-padded input (halo built in-kernel)
    # fm_ref  : (H*W, Cp)         VMEM scratch: conv feature map / accumulator
    H, W, cin = x_ref.shape[1], x_ref.shape[2], x_ref.shape[3]
    hw = fm_ref.shape[0]

    # --- build the 1-pixel halo in VMEM (input is DMA'd unpadded from HBM) -----------
    xpad_ref[...] = jnp.zeros_like(xpad_ref)
    xpad_ref[1:H + 1, 1:W + 1, :] = x_ref[0]

    # --- 3x3 conv as ONE MXU matmul with fat contraction K = 9*Cin --------------------
    taps = [xpad_ref[dy:dy + H, dx:dx + W, :]
            for dy in range(3) for dx in range(3)]              # 9 x (H, W, Cin)
    patch = jnp.concatenate(taps, axis=-1).reshape(hw, 9 * cin)  # (H*W, 9*Cin)
    acc = jnp.dot(patch, w3_ref[...], preferred_element_type=jnp.float32)  # (H*W, Cp) f32

    # --- folded BN + ReLU, kept in a VMEM scratch ref ----------------------------------
    fm_ref[...] = jnp.maximum(acc * s1_ref[...] + b1_ref[...], 0.0)

    # --- channel attention: global mean -> 1x1 conv -> BN -> sigmoid (all f32) --------
    pooled = jnp.sum(fm_ref[...], axis=0, keepdims=True) * (1.0 / hw)   # (1, Cp)
    se = jnp.dot(pooled, w1_ref[...], preferred_element_type=jnp.float32)
    se = jax.nn.sigmoid(se * s2_ref[...] + b2_ref[...])                 # (1, Cp)

    # --- channel-wise re-weighting; lane-dense (unmasked) store ------------------------
    o_ref[0] = (fm_ref[...] * se).astype(o_ref.dtype)


def attention_refinement(x_nhwc, w3, scale1, bias1, w1, scale2, bias2,
                         *, compute_dtype=jnp.float32):
    """x_nhwc: (N, H, W, Cin). Returns (N, H, W, Cout) float32.

    compute_dtype controls the conv-matmul operand dtype (f32 accumulation either way).
    bf16 is recommended on v6e/v7x; keep f32 on v5e or for tight numerical tolerances.
    """
    N, H, W, Cin = x_nhwc.shape
    Cout = w3.shape[-1]
    Cp = ((Cout + _LANE - 1) // _LANE) * _LANE        # lane-dense channel count
    pc = Cp - Cout

    # Zero-extend the output-channel dim to a multiple of 128 lanes. Padded lanes carry
    # exact zeros through conv/BN/ReLU (weight columns, scale and bias are zero) and are
    # sliced off after the kernel, so the math is unchanged.
    w3_flat = jnp.pad(w3, ((0, 0), (0, 0), (0, 0), (0, pc))) \
                 .reshape(9 * Cin, Cp).astype(compute_dtype)
    w1_p = jnp.pad(w1, ((0, pc), (0, pc))).astype(jnp.float32)
    s1 = jnp.pad(scale1, (0, pc)).reshape(1, Cp).astype(jnp.float32)
    b1 = jnp.pad(bias1, (0, pc)).reshape(1, Cp).astype(jnp.float32)
    s2 = jnp.pad(scale2, (0, pc)).reshape(1, Cp).astype(jnp.float32)
    b2 = jnp.pad(bias2, (0, pc)).reshape(1, Cp).astype(jnp.float32)
    x_in = x_nhwc.astype(compute_dtype)               # no spatial pre-padding in HBM

    grid_spec = pltpu.PrefetchScalarGridSpec(
        num_scalar_prefetch=0,
        grid=(N,),
        in_specs=[
            pl.BlockSpec((1, H, W, Cin), lambda n: (n, 0, 0, 0)),
            pl.BlockSpec((9 * Cin, Cp), lambda n: (0, 0)),
            pl.BlockSpec((1, Cp), lambda n: (0, 0)),
            pl.BlockSpec((1, Cp), lambda n: (0, 0)),
            pl.BlockSpec((Cp, Cp), lambda n: (0, 0)),
            pl.BlockSpec((1, Cp), lambda n: (0, 0)),
            pl.BlockSpec((1, Cp), lambda n: (0, 0)),
        ],
        out_specs=pl.BlockSpec((1, H * W, Cp), lambda n: (n, 0, 0)),
        scratch_shapes=[
            pltpu.VMEM((H + 2, W + 2, Cin), compute_dtype),   # padded-input halo
            pltpu.VMEM((H * W, Cp), jnp.float32),             # feature map / accumulator
        ],
    )

    out = pl.pallas_call(
        _attention_refinement_kernel,
        out_shape=jax.ShapeDtypeStruct((N, H * W, Cp), jnp.float32),
        grid_spec=grid_spec,
        compiler_params=pltpu.CompilerParams(
            dimension_semantics=("parallel",),
            vmem_limit_bytes=32 * 1024 * 1024),
    )(x_in, w3_flat, s1, b1, w1_p, s2, b2)

    return out.reshape(N, H, W, Cp)[..., :Cout]


def _fold_bn(gamma, beta, mean, var, eps=1e-5):
    scale = gamma / jnp.sqrt(var + eps)
    bias = beta - mean * scale
    return scale, bias


def _reference(x_nhwc, w3, scale1, bias1, w1, scale2, bias2):
    """Pure-JAX reference (eval-mode BN), NHWC."""
    fm = lax.conv_general_dilated(
        x_nhwc, w3, window_strides=(1, 1), padding=((1, 1), (1, 1)),
        dimension_numbers=("NHWC", "HWIO", "NHWC"))
    fm = jax.nn.relu(fm * scale1 + bias1)
    pooled = jnp.mean(fm, axis=(1, 2), keepdims=True)            # (N,1,1,C)
    se = jnp.einsum("nabc,co->nabo", pooled, w1)
    se = jax.nn.sigmoid(se * scale2 + bias2)
    return fm * se


if __name__ == "__main__":
    key = jax.random.PRNGKey(0)
    ks = jax.random.split(key, 10)

    N, H, W = 2, 16, 16
    in_planes, out_planes = 4, 8

    # input (NHWC layout; the PyTorch module would get the NCHW transpose)
    x = jax.random.normal(ks[0], (N, H, W, in_planes), dtype=jnp.float32)

    # conv_3x3 weight (HWIO) + BN1 params (eval-mode running stats)
    w3 = jax.random.normal(ks[1], (3, 3, in_planes, out_planes),
                           dtype=jnp.float32) * 0.2
    g1 = 1.0 + 0.1 * jax.random.normal(ks[2], (out_planes,), dtype=jnp.float32)
    be1 = 0.1 * jax.random.normal(ks[3], (out_planes,), dtype=jnp.float32)
    m1 = 0.1 * jax.random.normal(ks[4], (out_planes,), dtype=jnp.float32)
    v1 = jnp.abs(jax.random.normal(ks[5], (out_planes,), dtype=jnp.float32)) + 0.5

    # channel_attention 1x1 conv weight (Cin=Cout) + BN2 params
    w1 = jax.random.normal(ks[6], (out_planes, out_planes),
                           dtype=jnp.float32) * 0.2
    g2 = 1.0 + 0.1 * jax.random.normal(ks[7], (out_planes,), dtype=jnp.float32)
    be2 = 0.1 * jax.random.normal(ks[8], (out_planes,), dtype=jnp.float32)
    m2 = 0.1 * jax.random.normal(ks[9], (out_planes,), dtype=jnp.float32)
    v2 = jnp.ones((out_planes,), dtype=jnp.float32)

    scale1, bias1 = _fold_bn(g1, be1, m1, v1)
    scale2, bias2 = _fold_bn(g2, be2, m2, v2)

    # f32 compute for the correctness check; pass compute_dtype=jnp.bfloat16 on v6e/v7x.
    out = attention_refinement(x, w3, scale1, bias1, w1, scale2, bias2)
    out = jax.block_until_ready(out)

    ref = _reference(x, w3, scale1, bias1, w1, scale2, bias2)
    assert out.shape == (N, H, W, out_planes)
    assert jnp.allclose(out, ref, rtol=1e-4, atol=1e-4), (
        float(jnp.max(jnp.abs(out - ref))))

    print("KERNEL_OK")
</pallas_src>

<mosaic_0001>
module attributes {stable_mosaic.version = 11 : i64} {
  func.func @_attention_refinement_kernel(%arg0: i32, %arg1: memref<1x16x16x4xf32, #tpu.memory_space<vmem>>, %arg2: memref<36x128xf32, #tpu.memory_space<vmem>>, %arg3: memref<1x128xf32, #tpu.memory_space<vmem>>, %arg4: memref<1x128xf32, #tpu.memory_space<vmem>>, %arg5: memref<128x128xf32, #tpu.memory_space<vmem>>, %arg6: memref<1x128xf32, #tpu.memory_space<vmem>>, %arg7: memref<1x128xf32, #tpu.memory_space<vmem>>, %arg8: memref<1x256x128xf32, #tpu.memory_space<vmem>>, %arg9: memref<18x18x4xf32, #tpu.memory_space<vmem>>, %arg10: memref<256x128xf32, #tpu.memory_space<vmem>>) attributes {dimension_semantics = [#tpu.dimension_semantics<parallel>], iteration_bounds = array<i64: 2>, scalar_prefetch = 0 : i64, scratch_operands = 2 : i64, tpu.core_type = #tpu.core_type<tc>, window_params = [{transform_indices = @transform_0, window_bounds = array<i64: 1, 16, 16, 4>}, {pipeline_mode = #tpu.pipeline_mode<synchronous>, transform_indices = @transform_1, window_bounds = array<i64: 36, 128>}, {pipeline_mode = #tpu.pipeline_mode<synchronous>, transform_indices = @transform_2, window_bounds = array<i64: 1, 128>}, {pipeline_mode = #tpu.pipeline_mode<synchronous>, transform_indices = @transform_3, window_bounds = array<i64: 1, 128>}, {pipeline_mode = #tpu.pipeline_mode<synchronous>, transform_indices = @transform_4, window_bounds = array<i64: 128, 128>}, {pipeline_mode = #tpu.pipeline_mode<synchronous>, transform_indices = @transform_5, window_bounds = array<i64: 1, 128>}, {pipeline_mode = #tpu.pipeline_mode<synchronous>, transform_indices = @transform_6, window_bounds = array<i64: 1, 128>}, {transform_indices = @transform_7, window_bounds = array<i64: 1, 256, 128>}]} {
    %cst = arith.constant 0.000000e+00 : f32
    %0 = vector.broadcast %cst : f32 to vector<18x18x4xf32>
    %c0 = arith.constant 0 : index
    %c0_0 = arith.constant 0 : index
    %c0_1 = arith.constant 0 : index
    %1 = vector.load %arg9[%c0, %c0_0, %c0_1] : memref<18x18x4xf32, #tpu.memory_space<vmem>>, vector<18x18x4xf32>
    tpu.vector_store %arg9[%c0, %c0_0, %c0_1], %0 {strides = array<i32>} : memref<18x18x4xf32, #tpu.memory_space<vmem>>, vector<18x18x4xf32>,
    %c0_2 = arith.constant 0 : index
    %c0_3 = arith.constant 0 : index
    %c0_4 = arith.constant 0 : index
    %c0_5 = arith.constant 0 : index
    %2 = vector.load %arg1[%c0_2, %c0_3, %c0_4, %c0_5] : memref<1x16x16x4xf32, #tpu.memory_space<vmem>>, vector<1x16x16x4xf32>
    %3 = vector.shape_cast %2 : vector<1x16x16x4xf32> to vector<16x16x4xf32>
    %c1 = arith.constant 1 : index
    %c1_6 = arith.constant 1 : index
    %c0_7 = arith.constant 0 : index
    %4 = vector.load %arg9[%c1, %c1_6, %c0_7] : memref<18x18x4xf32, #tpu.memory_space<vmem>>, vector<16x16x4xf32>
    tpu.vector_store %arg9[%c1, %c1_6, %c0_7], %3 {strides = array<i32>} : memref<18x18x4xf32, #tpu.memory_space<vmem>>, vector<16x16x4xf32>,
    %c0_8 = arith.constant 0 : index
    %c0_9 = arith.constant 0 : index
    %c0_10 = arith.constant 0 : index
    %5 = vector.load %arg9[%c0_8, %c0_9, %c0_10] : memref<18x18x4xf32, #tpu.memory_space<vmem>>, vector<16x16x4xf32>
    %c0_11 = arith.constant 0 : index
    %c1_12 = arith.constant 1 : index
    %c0_13 = arith.constant 0 : index
    %6 = vector.load %arg9[%c0_11, %c1_12, %c0_13] : memref<18x18x4xf32, #tpu.memory_space<vmem>>, vector<16x16x4xf32>
    %c0_14 = arith.constant 0 : index
    %c2 = arith.constant 2 : index
    %c0_15 = arith.constant 0 : index
    %7 = vector.load %arg9[%c0_14, %c2, %c0_15] : memref<18x18x4xf32, #tpu.memory_space<vmem>>, vector<16x16x4xf32>
    %c1_16 = arith.constant 1 : index
    %c0_17 = arith.constant 0 : index
    %c0_18 = arith.constant 0 : index
    %8 = vector.load %arg9[%c1_16, %c0_17, %c0_18] : memref<18x18x4xf32, #tpu.memory_space<vmem>>, vector<16x16x4xf32>
    %c1_19 = arith.constant 1 : index
    %c1_20 = arith.constant 1 : index
    %c0_21 = arith.constant 0 : index
    %9 = vector.load %arg9[%c1_19, %c1_20, %c0_21] : memref<18x18x4xf32, #tpu.memory_space<vmem>>, vector<16x16x4xf32>
    %c1_22 = arith.constant 1 : index
    %c2_23 = arith.constant 2 : index
    %c0_24 = arith.constant 0 : index
    %10 = vector.load %arg9[%c1_22, %c2_23, %c0_24] : memref<18x18x4xf32, #tpu.memory_space<vmem>>, vector<16x16x4xf32>
    %c2_25 = arith.constant 2 : index
    %c0_26 = arith.constant 0 : index
    %c0_27 = arith.constant 0 : index
    %11 = vector.load %arg9[%c2_25, %c0_26, %c0_27] : memref<18x18x4xf32, #tpu.memory_space<vmem>>, vector<16x16x4xf32>
    %c2_28 = arith.constant 2 : index
    %c1_29 = arith.constant 1 : index
    %c0_30 = arith.constant 0 : index
    %12 = vector.load %arg9[%c2_28, %c1_29, %c0_30] : memref<18x18x4xf32, #tpu.memory_space<vmem>>, vector<16x16x4xf32>
    %c2_31 = arith.constant 2 : index
    %c2_32 = arith.constant 2 : index
    %c0_33 = arith.constant 0 : index
    %13 = vector.load %arg9[%c2_31, %c2_32, %c0_33] : memref<18x18x4xf32, #tpu.memory_space<vmem>>, vector<16x16x4xf32>
    %14 = tpu.concatenate %5, %6, %7, %8, %9, %10, %11, %12, %13 in 2 : vector<16x16x4xf32>, vector<16x16x4xf32>, vector<16x16x4xf32>, vector<16x16x4xf32>, vector<16x16x4xf32>, vector<16x16x4xf32>, vector<16x16x4xf32>, vector<16x16x4xf32>, vector<16x16x4xf32> -> vector<16x16x36xf32>
    %15 = vector.shape_cast %14 : vector<16x16x36xf32> to vector<256x36xf32>
    %c0_34 = arith.constant 0 : index
    %c0_35 = arith.constant 0 : index
    %16 = vector.load %arg2[%c0_34, %c0_35] : memref<36x128xf32, #tpu.memory_space<vmem>>, vector<36x128xf32>
    %cst_36 = arith.constant dense<0.000000e+00> : vector<256x128xf32>
    %17 = tpu.matmul %15, %16, %cst_36 {dimension_numbers = #tpu.dot_dimension_numbers<[1], [0], [0], [1], [0, 0, 1, 1], [], []>} : vector<256x36xf32>, vector<36x128xf32>, vector<256x128xf32> -> vector<256x128xf32>
    %c0_37 = arith.constant 0 : index
    %c0_38 = arith.constant 0 : index
    %18 = vector.load %arg3[%c0_37, %c0_38] : memref<1x128xf32, #tpu.memory_space<vmem>>, vector<1x128xf32>
    %19 = vector.broadcast %18 : vector<1x128xf32> to vector<256x128xf32>
    %20 = arith.mulf %17, %19 : vector<256x128xf32>
    %c0_39 = arith.constant 0 : index
    %c0_40 = arith.constant 0 : index
    %21 = vector.load %arg4[%c0_39, %c0_40] : memref<1x128xf32, #tpu.memory_space<vmem>>, vector<1x128xf32>
    %22 = vector.broadcast %21 : vector<1x128xf32> to vector<256x128xf32>
    %23 = arith.addf %20, %22 : vector<256x128xf32>
    %cst_41 = arith.constant 0.000000e+00 : f32
    %24 = vector.broadcast %cst_41 : f32 to vector<256x128xf32>
    %25 = arith.maximumf %23, %24 : vector<256x128xf32>
    %c0_42 = arith.constant 0 : index
    %c0_43 = arith.constant 0 : index
    %26 = vector.load %arg10[%c0_42, %c0_43] : memref<256x128xf32, #tpu.memory_space<vmem>>, vector<256x128xf32>
    tpu.vector_store %arg10[%c0_42, %c0_43], %25 {strides = array<i32>} : memref<256x128xf32, #tpu.memory_space<vmem>>, vector<256x128xf32>,
    %c0_44 = arith.constant 0 : index
    %c0_45 = arith.constant 0 : index
    %27 = vector.load %arg10[%c0_44, %c0_45] : memref<256x128xf32, #tpu.memory_space<vmem>>, vector<256x128xf32>
    %cst_46 = arith.constant dense<0.000000e+00> : vector<128xf32>
    %28 = vector.multi_reduction <add>, %27, %cst_46 [0] : vector<256x128xf32> to vector<128xf32>
    %29 = vector.shape_cast %28 : vector<128xf32> to vector<1x128xf32>
    %cst_47 = arith.constant 3.906250e-03 : f32
    %30 = vector.broadcast %cst_47 : f32 to vector<1x128xf32>
    %31 = arith.mulf %29, %30 : vector<1x128xf32>
    %c0_48 = arith.constant 0 : index
    %c0_49 = arith.constant 0 : index
    %32 = vector.load %arg5[%c0_48, %c0_49] : memref<128x128xf32, #tpu.memory_space<vmem>>, vector<128x128xf32>
    %cst_50 = arith.constant dense<0.000000e+00> : vector<1x128xf32>
    %33 = tpu.matmul %31, %32, %cst_50 {dimension_numbers = #tpu.dot_dimension_numbers<[1], [0], [0], [1], [0, 0, 1, 1], [], []>} : vector<1x128xf32>, vector<128x128xf32>, vector<1x128xf32> -> vector<1x128xf32>
    %c0_51 = arith.constant 0 : index
    %c0_52 = arith.constant 0 : index
    %34 = vector.load %arg6[%c0_51, %c0_52] : memref<1x128xf32, #tpu.memory_space<vmem>>, vector<1x128xf32>
    %35 = arith.mulf %33, %34 : vector<1x128xf32>
    %c0_53 = arith.constant 0 : index
    %c0_54 = arith.constant 0 : index
    %36 = vector.load %arg7[%c0_53, %c0_54] : memref<1x128xf32, #tpu.memory_space<vmem>>, vector<1x128xf32>
    %37 = arith.addf %35, %36 : vector<1x128xf32>
    %38 = arith.negf %37 : vector<1x128xf32>
    %39 = math.exp %38 : vector<1x128xf32>
    %cst_55 = arith.constant 1.000000e+00 : f32
    %40 = vector.broadcast %cst_55 : f32 to vector<1x128xf32>
    %41 = arith.addf %40, %39 : vector<1x128xf32>
    %42 = arith.divf %40, %41 : vector<1x128xf32>
    %c0_56 = arith.constant 0 : index
    %c0_57 = arith.constant 0 : index
    %43 = vector.load %arg10[%c0_56, %c0_57] : memref<256x128xf32, #tpu.memory_space<vmem>>, vector<256x128xf32>
    %44 = vector.broadcast %42 : vector<1x128xf32> to vector<256x128xf32>
    %45 = arith.mulf %43, %44 : vector<256x128xf32>
    %c0_58 = arith.constant 0 : index
    %c0_59 = arith.constant 0 : index
    %c0_60 = arith.constant 0 : index
    %46 = vector.load %arg8[%c0_58, %c0_59, %c0_60] : memref<1x256x128xf32, #tpu.memory_space<vmem>>, vector<1x256x128xf32>
    %47 = vector.shape_cast %46 : vector<1x256x128xf32> to vector<256x128xf32>
    %48 = vector.shape_cast %45 : vector<256x128xf32> to vector<1x256x128xf32>
    tpu.vector_store %arg8[%c0_58, %c0_59, %c0_60], %48 {strides = array<i32>} : memref<1x256x128xf32, #tpu.memory_space<vmem>>, vector<1x256x128xf32>,
    return
  }
  func.func @transform_0(%arg0: i32) -> (i32, i32, i32, i32) {
    %c0_i32 = arith.constant 0 : i32
    %c0_i32_0 = arith.constant 0 : i32
    %c0_i32_1 = arith.constant 0 : i32
    %c0_i32_2 = arith.constant 0 : i32
    return %arg0, %c0_i32, %c0_i32_0, %c0_i32_1 : i32, i32, i32, i32
  }
  func.func @transform_1(%arg0: i32) -> (i32, i32) {
    %c0_i32 = arith.constant 0 : i32
    %c0_i32_0 = arith.constant 0 : i32
    %c0_i32_1 = arith.constant 0 : i32
    return %c0_i32, %c0_i32_0 : i32, i32
  }
  func.func @transform_2(%arg0: i32) -> (i32, i32) {
    %c0_i32 = arith.constant 0 : i32
    %c0_i32_0 = arith.constant 0 : i32
    %c0_i32_1 = arith.constant 0 : i32
    return %c0_i32, %c0_i32_0 : i32, i32
  }
  func.func @transform_3(%arg0: i32) -> (i32, i32) {
    %c0_i32 = arith.constant 0 : i32
    %c0_i32_0 = arith.constant 0 : i32
    %c0_i32_1 = arith.constant 0 : i32
    return %c0_i32, %c0_i32_0 : i32, i32
  }
  func.func @transform_4(%arg0: i32) -> (i32, i32) {
    %c0_i32 = arith.constant 0 : i32
    %c0_i32_0 = arith.constant 0 : i32
    %c0_i32_1 = arith.constant 0 : i32
    return %c0_i32, %c0_i32_0 : i32, i32
  }
  func.func @transform_5(%arg0: i32) -> (i32, i32) {
    %c0_i32 = arith.constant 0 : i32
    %c0_i32_0 = arith.constant 0 : i32
    %c0_i32_1 = arith.constant 0 : i32
    return %c0_i32, %c0_i32_0 : i32, i32
  }
  func.func @transform_6(%arg0: i32) -> (i32, i32) {
    %c0_i32 = arith.constant 0 : i32
    %c0_i32_0 = arith.constant 0 : i32
    %c0_i32_1 = arith.constant 0 : i32
    return %c0_i32, %c0_i32_0 : i32, i32
  }
  func.func @transform_7(%arg0: i32) -> (i32, i32, i32) {
    %c0_i32 = arith.constant 0 : i32
    %c0_i32_0 = arith.constant 0 : i32
    %c0_i32_1 = arith.constant 0 : i32
    return %arg0, %c0_i32, %c0_i32_0 : i32, i32, i32
  }
}

</mosaic_0001>

<llo_original>
// kernel: tpu_custom_call.1
$region0: #{tpu_custom_call.1}
  #allocation0 [shape = 'u32[]', space=smem, size = 0x4, offset = 0x4, fixed_abs, tag = 'smem constant byte address 0x4 - core index']
  #allocation1 [shape = 'u32[144,128]{1,0:T(1,128)}', space=vmem, size = 0x12000, scoped, tag = 'internal scratch']
  #allocation2 [shape = 'f32[18,18,4]{2,1,0:T(8,128)}', space=vmem, size = 0x36000, scoped, tag = 'scratch operand']
  #allocation3 [shape = 'f32[256,128]{1,0:T(8,128)}', space=vmem, size = 0x20000, scoped, tag = 'scratch operand']
  %s0 = inlined_call_operand.vmem [shape: f32[2,16,16,4], index: 0, kind: input, shape index: {}]
  %s1 = inlined_call_operand.vmem [shape: f32[36,128], index: 1, kind: input, shape index: {}]
  %s2 = inlined_call_operand.vmem [shape: f32[1,128], index: 2, kind: input, shape index: {}]
  %s3 = inlined_call_operand.vmem [shape: f32[1,128], index: 3, kind: input, shape index: {}]
  %s4 = inlined_call_operand.vmem [shape: f32[128,128], index: 4, kind: input, shape index: {}]
  %s5 = inlined_call_operand.vmem [shape: f32[1,128], index: 5, kind: input, shape index: {}]
  %s6 = inlined_call_operand.vmem [shape: f32[1,128], index: 6, kind: input, shape index: {}]
  %s7 = inlined_call_operand.hbm [shape: f32[2,256,128], index: 7, kind: output, shape index: {}]
  %s8 = sld [smem:[#allocation0]]
  $region61: #{tpu_custom_call.1} parent=0
    _
  %s10 = ssub.s32 1, %s8
  %s11 = scalar_select 0, %s10, %s8
  $region1: #{tpu_custom_call.1} parent=0
    #allocation4 [shape = 'u8[262144]{0}', space=vmem, size = 0x40000, scoped, tag = 'output window, operand 0']
    #allocation5 [shape = 's32[2]{0}', space=sflag, size = 0x8, scoped, tag = 'scoped memory for tpu_custom_call.1']
    %12 = vsyncpa [#allocation5], 0
    %s13 = scalar_lea.sflag [#allocation5], 1
    %14 = vsyncpa %s13, 0
    loop: start=0, step=1, limit=4
    $region2: #{tpu_custom_call.1} parent=1 // loop_pre_header
      _
    $region3: #{tpu_custom_call.1} parent=1 // loop_header
      %s16 = sphi 0, %s20
      %p17 = scmp.ge.s32.totalorder %s16, 4
      %s26 = sphi 0, %s28
      %s29 = sphi 0, %s26
      %s30 = sphi 0, %s29
      %s46 = sphi 0, %s30
      %s50 = sphi 0, %s50
      %s52 = sphi 0, %s50
      %s53 = sphi 0, %s52
      %s67 = sphi 0, %s53
      %s71 = sphi 0, %s71
      %s73 = sphi 0, %s71
      %s74 = sphi 0, %s73
      %s88 = sphi 0, %s74
      %s92 = sphi 0, %s92
      %s94 = sphi 0, %s92
      %s95 = sphi 0, %s94
      %s109 = sphi 0, %s95
      %s113 = sphi 0, %s113
      %s115 = sphi 0, %s113
      %s116 = sphi 0, %s115
      %s130 = sphi 0, %s116
      %s134 = sphi 0, %s134
      %s136 = sphi 0, %s134
      %s137 = sphi 0, %s136
      %s151 = sphi 0, %s137
      %s155 = sphi 0, %s155
      %s157 = sphi 0, %s155
      %s158 = sphi 0, %s157
      %s172 = sphi 0, %s158
      %s178 = sphi 0, %s180
      %s181 = sphi 0, %s178
      %s182 = sphi 0, %s181
      %s198 = sphi 0, %s182
    $region4: #{tpu_custom_call.1} parent=1 // loop_header_branch
      %19 = sbr.rel (%p17) target = $region8
    $region5: #{tpu_custom_call.1} parent=1 // loop_body
      %s21 = ssub.s32 %s16, 1
      %s22 = ssub.s32 %s16, 2
      %s23 = sadd.s32 %s16, 1
      %s24 = ssub.s32 %s16, %s23
      %p25 = scmp.eq.s32.totalorder %s24, 0
      %s27 = sadd.s32 %s26, 1
      %s28 = scalar_select %p25, %s26, %s27
      %p31 = pneg %p25
      %p32 = scmp.eq.s32.totalorder %s16, 1
      %p33 = por %p31, %p32
      %p34 = scmp.ne.s32.totalorder %s26, %s29
      %p35 = scmp.eq.s32.totalorder %s16, 0
      %p36 = por %p34, %p35
      %p37 = scmp.ne.s32.totalorder %s26, %s29
      %p38 = scmp.eq.s32.totalorder %s21, 1
      %p39 = por %p37, %p38
      %p40 = scmp.ne.s32.totalorder %s29, %s30
      %p41 = scmp.eq.s32.totalorder %s21, 0
      %p42 = por %p40, %p41
      %p43 = scmp.ne.s32.totalorder %s29, %s30
      %p44 = scmp.eq.s32.totalorder %s22, 1
      %p45 = por %p43, %p44
      %p47 = scmp.ne.s32.totalorder %s30, %s46
      %p48 = scmp.eq.s32.totalorder %s22, 0
      %p49 = por %p47, %p48
      %s51 = sadd.s32 %s50, 1
      %p54 = scmp.eq.s32.totalorder %s16, 1
      %p55 = scmp.ne.s32.totalorder %s50, %s52
      %p56 = scmp.eq.s32.totalorder %s16, 0
      %p57 = por %p55, %p56
      %p58 = scmp.ne.s32.totalorder %s50, %s52
      %p59 = scmp.eq.s32.totalorder %s21, 1
      %p60 = por %p58, %p59
      %p61 = scmp.ne.s32.totalorder %s52, %s53
      %p62 = scmp.eq.s32.totalorder %s21, 0
      %p63 = por %p61, %p62
      %p64 = scmp.ne.s32.totalorder %s52, %s53
      %p65 = scmp.eq.s32.totalorder %s22, 1
      %p66 = por %p64, %p65
      %p68 = scmp.ne.s32.totalorder %s53, %s67
      %p69 = scmp.eq.s32.totalorder %s22, 0
      %p70 = por %p68, %p69
      %s72 = sadd.s32 %s71, 1
      %p75 = scmp.eq.s32.totalorder %s16, 1
      %p76 = scmp.ne.s32.totalorder %s71, %s73
      %p77 = scmp.eq.s32.totalorder %s16, 0
      %p78 = por %p76, %p77
      %p79 = scmp.ne.s32.totalorder %s71, %s73
      %p80 = scmp.eq.s32.totalorder %s21, 1
      %p81 = por %p79, %p80
      %p82 = scmp.ne.s32.totalorder %s73, %s74
      %p83 = scmp.eq.s32.totalorder %s21, 0
      %p84 = por %p82, %p83
      %p85 = scmp.ne.s32.totalorder %s73, %s74
      %p86 = scmp.eq.s32.totalorder %s22, 1
      %p87 = por %p85, %p86
      %p89 = scmp.ne.s32.totalorder %s74, %s88
      %p90 = scmp.eq.s32.totalorder %s22, 0
      %p91 = por %p89, %p90
      %s93 = sadd.s32 %s92, 1
      %p96 = scmp.eq.s32.totalorder %s16, 1
      %p97 = scmp.ne.s32.totalorder %s92, %s94
      %p98 = scmp.eq.s32.totalorder %s16, 0
      %p99 = por %p97, %p98
      %p100 = scmp.ne.s32.totalorder %s92, %s94
      %p101 = scmp.eq.s32.totalorder %s21, 1
      %p102 = por %p100, %p101
      %p103 = scmp.ne.s32.totalorder %s94, %s95
      %p104 = scmp.eq.s32.totalorder %s21, 0
      %p105 = por %p103, %p104
      %p106 = scmp.ne.s32.totalorder %s94, %s95
      %p107 = scmp.eq.s32.totalorder %s22, 1
      %p108 = por %p106, %p107
      %p110 = scmp.ne.s32.totalorder %s95, %s109
      %p111 = scmp.eq.s32.totalorder %s22, 0
      %p112 = por %p110, %p111
      %s114 = sadd.s32 %s113, 1
      %p117 = scmp.eq.s32.totalorder %s16, 1
      %p118 = scmp.ne.s32.totalorder %s113, %s115
      %p119 = scmp.eq.s32.totalorder %s16, 0
      %p120 = por %p118, %p119
      %p121 = scmp.ne.s32.totalorder %s113, %s115
      %p122 = scmp.eq.s32.totalorder %s21, 1
      %p123 = por %p121, %p122
      %p124 = scmp.ne.s32.totalorder %s115, %s116
      %p125 = scmp.eq.s32.totalorder %s21, 0
      %p126 = por %p124, %p125
      %p127 = scmp.ne.s32.totalorder %s115, %s116
      %p128 = scmp.eq.s32.totalorder %s22, 1
      %p129 = por %p127, %p128
      %p131 = scmp.ne.s32.totalorder %s116, %s130
      %p132 = scmp.eq.s32.totalorder %s22, 0
      %p133 = por %p131, %p132
      %s135 = sadd.s32 %s134, 1
      %p138 = scmp.eq.s32.totalorder %s16, 1
      %p139 = scmp.ne.s32.totalorder %s134, %s136
      %p140 = scmp.eq.s32.totalorder %s16, 0
      %p141 = por %p139, %p140
      %p142 = scmp.ne.s32.totalorder %s134, %s136
      %p143 = scmp.eq.s32.totalorder %s21, 1
      %p144 = por %p142, %p143
      %p145 = scmp.ne.s32.totalorder %s136, %s137
      %p146 = scmp.eq.s32.totalorder %s21, 0
      %p147 = por %p145, %p146
      %p148 = scmp.ne.s32.totalorder %s136, %s137
      %p149 = scmp.eq.s32.totalorder %s22, 1
      %p150 = por %p148, %p149
      %p152 = scmp.ne.s32.totalorder %s137, %s151
      %p153 = scmp.eq.s32.totalorder %s22, 0
      %p154 = por %p152, %p153
      %s156 = sadd.s32 %s155, 1
      %p159 = scmp.eq.s32.totalorder %s16, 1
      %p160 = scmp.ne.s32.totalorder %s155, %s157
      %p161 = scmp.eq.s32.totalorder %s16, 0
      %p162 = por %p160, %p161
      %p163 = scmp.ne.s32.totalorder %s155, %s157
      %p164 = scmp.eq.s32.totalorder %s21, 1
      %p165 = por %p163, %p164
      %p166 = scmp.ne.s32.totalorder %s157, %s158
      %p167 = scmp.eq.s32.totalorder %s21, 0
      %p168 = por %p166, %p167
      %p169 = scmp.ne.s32.totalorder %s157, %s158
      %p170 = scmp.eq.s32.totalorder %s22, 1
      %p171 = por %p169, %p170
      %p173 = scmp.ne.s32.totalorder %s158, %s172
      %p174 = scmp.eq.s32.totalorder %s22, 0
      %p175 = por %p173, %p174
      %s176 = ssub.s32 %s16, %s23
      %p177 = scmp.eq.s32.totalorder %s176, 0
      %s179 = sadd.s32 %s178, 1
      %s180 = scalar_select %p177, %s178, %s179
      %p183 = pneg %p177
      %p184 = scmp.eq.s32.totalorder %s16, 1
      %p185 = por %p183, %p184
      %p186 = scmp.ne.s32.totalorder %s178, %s181
      %p187 = scmp.eq.s32.totalorder %s16, 0
      %p188 = por %p186, %p187
      %p189 = scmp.ne.s32.totalorder %s178, %s181
      %p190 = scmp.eq.s32.totalorder %s21, 1
      %p191 = por %p189, %p190
      %p192 = scmp.ne.s32.totalorder %s181, %s182
      %p193 = scmp.eq.s32.totalorder %s21, 0
      %p194 = por %p192, %p193
      %p195 = scmp.ne.s32.totalorder %s181, %s182
      %p196 = scmp.eq.s32.totalorder %s22, 1
      %p197 = por %p195, %p196
      %p199 = scmp.ne.s32.totalorder %s182, %s198
      %p200 = scmp.eq.s32.totalorder %s22, 0
      %p201 = por %p199, %p200
      %p202 = scmp.le.s32.totalorder 1, %s16
      %p203 = scmp.lt.s32.totalorder %s16, 3
      %p204 = pnand %p202, %p203
      %p205 = pneg %p204
      // Predicated region
      $region9: #{tpu_custom_call.1} parent=5 // pred_check
        _
      $region10: #{tpu_custom_call.1} parent=5 // pred_check_branch
        %207 = sbr.rel (%p204) target = $region12
      $region11: #{tpu_custom_call.1} parent=5 // pred_region
        %s208 = ssub.s32 %s16, 1
        // Predicated region
        $region13: #{tpu_custom_call.1} parent=11 // pred_check
          %p209 = pneg %p63
        $region14: #{tpu_custom_call.1} parent=11 // pred_check_branch
          %211 = sbr.rel (%p209) target = $region16
        $region15: #{tpu_custom_call.1} parent=11 // pred_region
          _
        $region16: #{tpu_custom_call.1} parent=11 // pred_fallthru
          _
        // Predicated region
        $region17: #{tpu_custom_call.1} parent=11 // pred_check
          %p212 = pneg %p84
        $region18: #{tpu_custom_call.1} parent=11 // pred_check_branch
          %214 = sbr.rel (%p212) target = $region20
        $region19: #{tpu_custom_call.1} parent=11 // pred_region
          _
        $region20: #{tpu_custom_call.1} parent=11 // pred_fallthru
          _
        // Predicated region
        $region21: #{tpu_custom_call.1} parent=11 // pred_check
          %p215 = pneg %p105
        $region22: #{tpu_custom_call.1} parent=11 // pred_check_branch
          %217 = sbr.rel (%p215) target = $region24
        $region23: #{tpu_custom_call.1} parent=11 // pred_region
          _
        $region24: #{tpu_custom_call.1} parent=11 // pred_fallthru
          _
        // Predicated region
        $region25: #{tpu_custom_call.1} parent=11 // pred_check
          %p218 = pneg %p126
        $region26: #{tpu_custom_call.1} parent=11 // pred_check_branch
          %220 = sbr.rel (%p218) target = $region28
        $region27: #{tpu_custom_call.1} parent=11 // pred_region
          _
        $region28: #{tpu_custom_call.1} parent=11 // pred_fallthru
          _
        // Predicated region
        $region29: #{tpu_custom_call.1} parent=11 // pred_check
          %p221 = pneg %p147
        $region30: #{tpu_custom_call.1} parent=11 // pred_check_branch
          %223 = sbr.rel (%p221) target = $region32
        $region31: #{tpu_custom_call.1} parent=11 // pred_region
          _
        $region32: #{tpu_custom_call.1} parent=11 // pred_fallthru
          _
        // Predicated region
        $region33: #{tpu_custom_call.1} parent=11 // pred_check
          %p224 = pneg %p168
        $region34: #{tpu_custom_call.1} parent=11 // pred_check_branch
          %226 = sbr.rel (%p224) target = $region36
        $region35: #{tpu_custom_call.1} parent=11 // pred_region
          _
        $region36: #{tpu_custom_call.1} parent=11 // pred_fallthru
          _
      $region12: #{tpu_custom_call.1} parent=5 // pred_fallthru
        _
      %p227 = scmp.lt.s32.totalorder %s16, 2
      // Predicated region
      $region37: #{tpu_custom_call.1} parent=5 // pred_check
        %p228 = pneg %p227
      $region38: #{tpu_custom_call.1} parent=5 // pred_check_branch
        %230 = sbr.rel (%p228) target = $region40
      $region39: #{tpu_custom_call.1} parent=5 // pred_region
        // Predicated region
        $region41: #{tpu_custom_call.1} parent=39 // pred_check
          %p231 = pneg %p36
        $region42: #{tpu_custom_call.1} parent=39 // pred_check_branch
          %233 = sbr.rel (%p231) target = $region44
        $region43: #{tpu_custom_call.1} parent=39 // pred_region
          %p234 = scmp.lt.s32.totalorder %s16, 1
          %s235 = scalar_select %p234, %s16, 1
          %s236 = smul.addr %s235, 32
          %s237 = smul.addr %s236, 8
          %s238 = scalar_lea.vmem %s0, %s237
        $region44: #{tpu_custom_call.1} parent=39 // pred_fallthru
          _
      $region40: #{tpu_custom_call.1} parent=5 // pred_fallthru
        _
      %p239 = scmp.le.s32.totalorder 1, %s16
      %p240 = scmp.lt.s32.totalorder %s16, 3
      %p241 = pnand %p239, %p240
      %p242 = pneg %p241
      // Predicated region
      $region45: #{tpu_custom_call.1} parent=5 // pred_check
        _
      $region46: #{tpu_custom_call.1} parent=5 // pred_check_branch
        %244 = sbr.rel (%p241) target = $region48
      $region47: #{tpu_custom_call.1} parent=5 // pred_region
        %s245 = ssub.s32 %s16, 1
        %p246 = scmp.lt.s32.totalorder %s21, 1
        %s247 = scalar_select %p246, %s21, 1
        %s248 = smul.addr %s247, 32
        %s249 = smul.addr %s248, 8
        %s250 = scalar_lea.vmem %s0, %s249
        %p251 = pneg %p42
        %p252 = pneg %p39
        %p253 = pneg %p63
        %p254 = pneg %p60
        %p255 = pneg %p84
        %p256 = pneg %p81
        %p257 = pneg %p105
        %p258 = pneg %p102
        %p259 = pneg %p126
        %p260 = pneg %p123
        %p261 = pneg %p147
        %p262 = pneg %p144
        %p263 = pneg %p168
        %p264 = pneg %p165
        %p265 = pneg %p194
        %p266 = pneg %p191
        %s267 = sand.u32 %s181, 1
        %s268 = scalar_lea.sflag [#allocation5], %s267
        %s269 = sand.u32 %s181, 1
        %s270 = smul.addr %s269, 256
        %s271 = scalar_lea.vmem [#allocation4], %s270
        %p272 = scmp.lt.s32.totalorder %s21, 1
        %s273 = scalar_select %p272, %s21, 1
        %s274 = smul.addr %s273, 32
        %s275 = smul.addr %s274, 8
        %s276 = scalar_lea.vmem %s0, %s275
        %vm277 = vcmask 31744
        %278 = vst.msk [vmem:[#allocation2] sm:$0xff] %vm277, 0.0
        %279 = vst.msk [vmem:[#allocation2 + $0x8] sm:$0xff] %vm277, 0.0
        %vm280 = vcmask 25600
        %281 = vst.msk [vmem:[#allocation2 + $0x10] sm:$0x3] %vm280, 0.0
        %282 = vst.msk [vmem:[#allocation2 + $0x18] sm:$0xff] %vm277, 0.0
        %283 = vst.msk [vmem:[#allocation2 + $0x20] sm:$0xff] %vm277, 0.0
        %284 = vst.msk [vmem:[#allocation2 + $0x28] sm:$0x3] %vm280, 0.0
        %285 = vst.msk [vmem:[#allocation2 + $0x30] sm:$0xff] %vm277, 0.0
        %286 = vst.msk [vmem:[#allocation2 + $0x38] sm:$0xff] %vm277, 0.0
        %287 = vst.msk [vmem:[#allocation2 + $0x40] sm:$0x3] %vm280, 0.0
        %288 = vst.msk [vmem:[#allocation2 + $0x48] sm:$0xff] %vm277, 0.0
        %289 = vst.msk [vmem:[#allocation2 + $0x50] sm:$0xff] %vm277, 0.0
        %290 = vst.msk [vmem:[#allocation2 + $0x58] sm:$0x3] %vm280, 0.0
        %291 = vst.msk [vmem:[#allocation2 + $0x60] sm:$0xff] %vm277, 0.0
        %292 = vst.msk [vmem:[#allocation2 + $0x68] sm:$0xff] %vm277, 0.0
        %293 = vst.msk [vmem:[#allocation2 + $0x70] sm:$0x3] %vm280, 0.0
        %294 = vst.msk [vmem:[#allocation2 + $0x78] sm:$0xff] %vm277, 0.0
        %295 = vst.msk [vmem:[#allocation2 + $0x80] sm:$0xff] %vm277, 0.0
        %296 = vst.msk [vmem:[#allocation2 + $0x88] sm:$0x3] %vm280, 0.0
        %297 = vst.msk [vmem:[#allocation2 + $0x90] sm:$0xff] %vm277, 0.0
        %298 = vst.msk [vmem:[#allocation2 + $0x98] sm:$0xff] %vm277, 0.0
        %299 = vst.msk [vmem:[#allocation2 + $0xa0] sm:$0x3] %vm280, 0.0
        %300 = vst.msk [vmem:[#allocation2 + $0xa8] sm:$0xff] %vm277, 0.0
        %301 = vst.msk [vmem:[#allocation2 + $0xb0] sm:$0xff] %vm277, 0.0
        %302 = vst.msk [vmem:[#allocation2 + $0xb8] sm:$0x3] %vm280, 0.0
        %303 = vst.msk [vmem:[#allocation2 + $0xc0] sm:$0xff] %vm277, 0.0
        %304 = vst.msk [vmem:[#allocation2 + $0xc8] sm:$0xff] %vm277, 0.0
        %305 = vst.msk [vmem:[#allocation2 + $0xd0] sm:$0x3] %vm280, 0.0
        %306 = vst.msk [vmem:[#allocation2 + $0xd8] sm:$0xff] %vm277, 0.0
        %307 = vst.msk [vmem:[#allocation2 + $0xe0] sm:$0xff] %vm277, 0.0
        %308 = vst.msk [vmem:[#allocation2 + $0xe8] sm:$0x3] %vm280, 0.0
        %309 = vst.msk [vmem:[#allocation2 + $0xf0] sm:$0xff] %vm277, 0.0
        %310 = vst.msk [vmem:[#allocation2 + $0xf8] sm:$0xff] %vm277, 0.0
        %311 = vst.msk [vmem:[#allocation2 + $0x100] sm:$0x3] %vm280, 0.0
        %312 = vst.msk [vmem:[#allocation2 + $0x108] sm:$0xff] %vm277, 0.0
        %313 = vst.msk [vmem:[#allocation2 + $0x110] sm:$0xff] %vm277, 0.0
        %314 = vst.msk [vmem:[#allocation2 + $0x118] sm:$0x3] %vm280, 0.0
        %315 = vst.msk [vmem:[#allocation2 + $0x120] sm:$0xff] %vm277, 0.0
        %316 = vst.msk [vmem:[#allocation2 + $0x128] sm:$0xff] %vm277, 0.0
        %317 = vst.msk [vmem:[#allocation2 + $0x130] sm:$0x3] %vm280, 0.0
        %318 = vst.msk [vmem:[#allocation2 + $0x138] sm:$0xff] %vm277, 0.0
        %319 = vst.msk [vmem:[#allocation2 + $0x140] sm:$0xff] %vm277, 0.0
        %320 = vst.msk [vmem:[#allocation2 + $0x148] sm:$0x3] %vm280, 0.0
        %321 = vst.msk [vmem:[#allocation2 + $0x150] sm:$0xff] %vm277, 0.0
        %322 = vst.msk [vmem:[#allocation2 + $0x158] sm:$0xff] %vm277, 0.0
        %323 = vst.msk [vmem:[#allocation2 + $0x160] sm:$0x3] %vm280, 0.0
        %324 = vst.msk [vmem:[#allocation2 + $0x168] sm:$0xff] %vm277, 0.0
        %325 = vst.msk [vmem:[#allocation2 + $0x170] sm:$0xff] %vm277, 0.0
        %326 = vst.msk [vmem:[#allocation2 + $0x178] sm:$0x3] %vm280, 0.0
        %327 = vst.msk [vmem:[#allocation2 + $0x180] sm:$0xff] %vm277, 0.0
        %328 = vst.msk [vmem:[#allocation2 + $0x188] sm:$0xff] %vm277, 0.0
        %329 = vst.msk [vmem:[#allocation2 + $0x190] sm:$0x3] %vm280, 0.0
        %330 = vst.msk [vmem:[#allocation2 + $0x198] sm:$0xff] %vm277, 0.0
        %331 = vst.msk [vmem:[#allocation2 + $0x1a0] sm:$0xff] %vm277, 0.0
        %332 = vst.msk [vmem:[#allocation2 + $0x1a8] sm:$0x3] %vm280, 0.0
        %v333 = vld [vmem:[%s276] sm:$0xff]
        %v334 = vld [vmem:[%s276 + $0x8] sm:$0xff]
        %v335 = vld [vmem:[%s276 + $0x10] sm:$0xff]
        %v336 = vld [vmem:[%s276 + $0x18] sm:$0xff]
        %v337 = vld [vmem:[%s276 + $0x20] sm:$0xff]
        %v338 = vld [vmem:[%s276 + $0x28] sm:$0xff]
        %v339 = vld [vmem:[%s276 + $0x30] sm:$0xff]
        %v340 = vld [vmem:[%s276 + $0x38] sm:$0xff]
        %v341 = vld [vmem:[%s276 + $0x40] sm:$0xff]
        %v342 = vld [vmem:[%s276 + $0x48] sm:$0xff]
        %v343 = vld [vmem:[%s276 + $0x50] sm:$0xff]
        %v344 = vld [vmem:[%s276 + $0x58] sm:$0xff]
        %v345 = vld [vmem:[%s276 + $0x60] sm:$0xff]
        %v346 = vld [vmem:[%s276 + $0x68] sm:$0xff]
        %v347 = vld [vmem:[%s276 + $0x70] sm:$0xff]
        %v348 = vld [vmem:[%s276 + $0x78] sm:$0xff]
        %v349 = vld [vmem:[%s276 + $0x80] sm:$0xff]
        %v350 = vld [vmem:[%s276 + $0x88] sm:$0xff]
        %v351 = vld [vmem:[%s276 + $0x90] sm:$0xff]
        %v352 = vld [vmem:[%s276 + $0x98] sm:$0xff]
        %v353 = vld [vmem:[%s276 + $0xa0] sm:$0xff]
        %v354 = vld [vmem:[%s276 + $0xa8] sm:$0xff]
        %v355 = vld [vmem:[%s276 + $0xb0] sm:$0xff]
        %v356 = vld [vmem:[%s276 + $0xb8] sm:$0xff]
        %v357 = vld [vmem:[%s276 + $0xc0] sm:$0xff]
        %v358 = vld [vmem:[%s276 + $0xc8] sm:$0xff]
        %v359 = vld [vmem:[%s276 + $0xd0] sm:$0xff]
        %v360 = vld [vmem:[%s276 + $0xd8] sm:$0xff]
        %v361 = vld [vmem:[%s276 + $0xe0] sm:$0xff]
        %v362 = vld [vmem:[%s276 + $0xe8] sm:$0xff]
        %v363 = vld [vmem:[%s276 + $0xf0] sm:$0xff]
        %v364 = vld [vmem:[%s276 + $0xf8] sm:$0xff]
        %s365 = scalar_lea.vmem [#allocation2], 24
        %366 = vst.msk [vmem:[%s365 + $0x1] sm:$0xff] %vm277, %v333
        %367 = vst.msk [vmem:[%s365 + $0x9] sm:$0xff] %vm277, %v334
        %368 = vst.msk [vmem:[%s365 + $0x19] sm:$0xff] %vm277, %v335
        %369 = vst.msk [vmem:[%s365 + $0x21] sm:$0xff] %vm277, %v336
        %370 = vst.msk [vmem:[%s365 + $0x31] sm:$0xff] %vm277, %v337
        %371 = vst.msk [vmem:[%s365 + $0x39] sm:$0xff] %vm277, %v338
        %372 = vst.msk [vmem:[%s365 + $0x49] sm:$0xff] %vm277, %v339
        %373 = vst.msk [vmem:[%s365 + $0x51] sm:$0xff] %vm277, %v340
        %374 = vst.msk [vmem:[%s365 + $0x61] sm:$0xff] %vm277, %v341
        %375 = vst.msk [vmem:[%s365 + $0x69] sm:$0xff] %vm277, %v342
        %376 = vst.msk [vmem:[%s365 + $0x79] sm:$0xff] %vm277, %v343
        %377 = vst.msk [vmem:[%s365 + $0x81] sm:$0xff] %vm277, %v344
        %378 = vst.msk [vmem:[%s365 + $0x91] sm:$0xff] %vm277, %v345
        %379 = vst.msk [vmem:[%s365 + $0x99] sm:$0xff] %vm277, %v346
        %380 = vst.msk [vmem:[%s365 + $0xa9] sm:$0xff] %vm277, %v347
        %381 = vst.msk [vmem:[%s365 + $0xb1] sm:$0xff] %vm277, %v348
        %382 = vst.msk [vmem:[%s365 + $0xc1] sm:$0xff] %vm277, %v349
        %383 = vst.msk [vmem:[%s365 + $0xc9] sm:$0xff] %vm277, %v350
        %384 = vst.msk [vmem:[%s365 + $0xd9] sm:$0xff] %vm277, %v351
        %385 = vst.msk [vmem:[%s365 + $0xe1] sm:$0xff] %vm277, %v352
        %386 = vst.msk [vmem:[%s365 + $0xf1] sm:$0xff] %vm277, %v353
        %387 = vst.msk [vmem:[%s365 + $0xf9] sm:$0xff] %vm277, %v354
        %388 = vst.msk [vmem:[%s365 + $0x109] sm:$0xff] %vm277, %v355
        %389 = vst.msk [vmem:[%s365 + $0x111] sm:$0xff] %vm277, %v356
        %390 = vst.msk [vmem:[%s365 + $0x121] sm:$0xff] %vm277, %v357
        %391 = vst.msk [vmem:[%s365 + $0x129] sm:$0xff] %vm277, %v358
        %392 = vst.msk [vmem:[%s365 + $0x139] sm:$0xff] %vm277, %v359
        %393 = vst.msk [vmem:[%s365 + $0x141] sm:$0xff] %vm277, %v360
        %394 = vst.msk [vmem:[%s365 + $0x151] sm:$0xff] %vm277, %v361
        %395 = vst.msk [vmem:[%s365 + $0x159] sm:$0xff] %vm277, %v362
        %396 = vst.msk [vmem:[%s365 + $0x169] sm:$0xff] %vm277, %v363
        %397 = vst.msk [vmem:[%s365 + $0x171] sm:$0xff] %vm277, %v364
        %v398 = vld [vmem:[#allocation2] sm:$0xff]
        %v399 = vld [vmem:[#allocation2 + $0x8] sm:$0xff]
        %v400 = vld [vmem:[#allocation2 + $0x18] sm:$0xff]
        %v401 = vld [vmem:[#allocation2 + $0x20] sm:$0xff]
        %v402 = vld [vmem:[#allocation2 + $0x30] sm:$0xff]
        %v403 = vld [vmem:[#allocation2 + $0x38] sm:$0xff]
        %v404 = vld [vmem:[#allocation2 + $0x48] sm:$0xff]
        %v405 = vld [vmem:[#allocation2 + $0x50] sm:$0xff]
        %v406 = vld [vmem:[#allocation2 + $0x60] sm:$0xff]
        %v407 = vld [vmem:[#allocation2 + $0x68] sm:$0xff]
        %v408 = vld [vmem:[#allocation2 + $0x78] sm:$0xff]
        %v409 = vld [vmem:[#allocation2 + $0x80] sm:$0xff]
        %v410 = vld [vmem:[#allocation2 + $0x90] sm:$0xff]
        %v411 = vld [vmem:[#allocation2 + $0x98] sm:$0xff]
        %v412 = vld [vmem:[#allocation2 + $0xa8] sm:$0xff]
        %v413 = vld [vmem:[#allocation2 + $0xb0] sm:$0xff]
        %v414 = vld [vmem:[#allocation2 + $0xc0] sm:$0xff]
        %v415 = vld [vmem:[#allocation2 + $0xc8] sm:$0xff]
        %v416 = vld [vmem:[#allocation2 + $0xd8] sm:$0xff]
        %v417 = vld [vmem:[#allocation2 + $0xe0] sm:$0xff]
        %v418 = vld [vmem:[#allocation2 + $0xf0] sm:$0xff]
        %v419 = vld [vmem:[#allocation2 + $0xf8] sm:$0xff]
        %v420 = vld [vmem:[#allocation2 + $0x108] sm:$0xff]
        %v421 = vld [vmem:[#allocation2 + $0x110] sm:$0xff]
        %v422 = vld [vmem:[#allocation2 + $0x120] sm:$0xff]
        %v423 = vld [vmem:[#allocation2 + $0x128] sm:$0xff]
        %v424 = vld [vmem:[#allocation2 + $0x138] sm:$0xff]
        %v425 = vld [vmem:[#allocation2 + $0x140] sm:$0xff]
        %v426 = vld [vmem:[#allocation2 + $0x150] sm:$0xff]
        %v427 = vld [vmem:[#allocation2 + $0x158] sm:$0xff]
        %v428 = vld [vmem:[#allocation2 + $0x168] sm:$0xff]
        %v429 = vld [vmem:[#allocation2 + $0x170] sm:$0xff]
        %v430 = vld [vmem:[#allocation2 + $0x1] sm:$0xff]
        %v431 = vld [vmem:[#allocation2 + $0x9] sm:$0xff]
        %v432 = vld [vmem:[#allocation2 + $0x19] sm:$0xff]
        %v433 = vld [vmem:[#allocation2 + $0x21] sm:$0xff]
        %v434 = vld [vmem:[#allocation2 + $0x31] sm:$0xff]
        %v435 = vld [vmem:[#allocation2 + $0x39] sm:$0xff]
        %v436 = vld [vmem:[#allocation2 + $0x49] sm:$0xff]
        %v437 = vld [vmem:[#allocation2 + $0x51] sm:$0xff]
        %v438 = vld [vmem:[#allocation2 + $0x61] sm:$0xff]
        %v439 = vld [vmem:[#allocation2 + $0x69] sm:$0xff]
        %v440 = vld [vmem:[#allocation2 + $0x79] sm:$0xff]
        %v441 = vld [vmem:[#allocation2 + $0x81] sm:$0xff]
        %v442 = vld [vmem:[#allocation2 + $0x91] sm:$0xff]
        %v443 = vld [vmem:[#allocation2 + $0x99] sm:$0xff]
        %v444 = vld [vmem:[#allocation2 + $0xa9] sm:$0xff]
        %v445 = vld [vmem:[#allocation2 + $0xb1] sm:$0xff]
        %v446 = vld [vmem:[#allocation2 + $0xc1] sm:$0xff]
        %v447 = vld [vmem:[#allocation2 + $0xc9] sm:$0xff]
        %v448 = vld [vmem:[#allocation2 + $0xd9] sm:$0xff]
        %v449 = vld [vmem:[#allocation2 + $0xe1] sm:$0xff]
        %v450 = vld [vmem:[#allocation2 + $0xf1] sm:$0xff]
        %v451 = vld [vmem:[#allocation2 + $0xf9] sm:$0xff]
        %v452 = vld [vmem:[#allocation2 + $0x109] sm:$0xff]
        %v453 = vld [vmem:[#allocation2 + $0x111] sm:$0xff]
        %v454 = vld [vmem:[#allocation2 + $0x121] sm:$0xff]
        %v455 = vld [vmem:[#allocation2 + $0x129] sm:$0xff]
        %v456 = vld [vmem:[#allocation2 + $0x139] sm:$0xff]
        %v457 = vld [vmem:[#allocation2 + $0x141] sm:$0xff]
        %v458 = vld [vmem:[#allocation2 + $0x151] sm:$0xff]
        %v459 = vld [vmem:[#allocation2 + $0x159] sm:$0xff]
        %v460 = vld [vmem:[#allocation2 + $0x169] sm:$0xff]
        %v461 = vld [vmem:[#allocation2 + $0x171] sm:$0xff]
        %v462 = vld [vmem:[#allocation2 + $0x2] sm:$0xff]
        %v463 = vld [vmem:[#allocation2 + $0xa] sm:$0xff]
        %v464 = vld [vmem:[#allocation2 + $0x1a] sm:$0xff]
        %v465 = vld [vmem:[#allocation2 + $0x22] sm:$0xff]
        %v466 = vld [vmem:[#allocation2 + $0x32] sm:$0xff]
        %v467 = vld [vmem:[#allocation2 + $0x3a] sm:$0xff]
        %v468 = vld [vmem:[#allocation2 + $0x4a] sm:$0xff]
        %v469 = vld [vmem:[#allocation2 + $0x52] sm:$0xff]
        %v470 = vld [vmem:[#allocation2 + $0x62] sm:$0xff]
        %v471 = vld [vmem:[#allocation2 + $0x6a] sm:$0xff]
        %v472 = vld [vmem:[#allocation2 + $0x7a] sm:$0xff]
        %v473 = vld [vmem:[#allocation2 + $0x82] sm:$0xff]
        %v474 = vld [vmem:[#allocation2 + $0x92] sm:$0xff]
        %v475 = vld [vmem:[#allocation2 + $0x9a] sm:$0xff]
        %v476 = vld [vmem:[#allocation2 + $0xaa] sm:$0xff]
        %v477 = vld [vmem:[#allocation2 + $0xb2] sm:$0xff]
        %v478 = vld [vmem:[#allocation2 + $0xc2] sm:$0xff]
        %v479 = vld [vmem:[#allocation2 + $0xca] sm:$0xff]
        %v480 = vld [vmem:[#allocation2 + $0xda] sm:$0xff]
        %v481 = vld [vmem:[#allocation2 + $0xe2] sm:$0xff]
        %v482 = vld [vmem:[#allocation2 + $0xf2] sm:$0xff]
        %v483 = vld [vmem:[#allocation2 + $0xfa] sm:$0xff]
        %v484 = vld [vmem:[#allocation2 + $0x10a] sm:$0xff]
        %v485 = vld [vmem:[#allocation2 + $0x112] sm:$0xff]
        %v486 = vld [vmem:[#allocation2 + $0x122] sm:$0xff]
        %v487 = vld [vmem:[#allocation2 + $0x12a] sm:$0xff]
        %v488 = vld [vmem:[#allocation2 + $0x13a] sm:$0xff]
        %v489 = vld [vmem:[#allocation2 + $0x142] sm:$0xff]
        %v490 = vld [vmem:[#allocation2 + $0x152] sm:$0xff]
        %v491 = vld [vmem:[#allocation2 + $0x15a] sm:$0xff]
        %v492 = vld [vmem:[#allocation2 + $0x16a] sm:$0xff]
        %v493 = vld [vmem:[#allocation2 + $0x172] sm:$0xff]
        %v494 = vld [vmem:[%s365] sm:$0xff]
        %v495 = vld [vmem:[%s365 + $0x8] sm:$0xff]
        %v496 = vld [vmem:[%s365 + $0x18] sm:$0xff]
        %v497 = vld [vmem:[%s365 + $0x20] sm:$0xff]
        %v498 = vld [vmem:[%s365 + $0x30] sm:$0xff]
        %v499 = vld [vmem:[%s365 + $0x38] sm:$0xff]
        %v500 = vld [vmem:[%s365 + $0x48] sm:$0xff]
        %v501 = vld [vmem:[%s365 + $0x50] sm:$0xff]
        %v502 = vld [vmem:[%s365 + $0x60] sm:$0xff]
        %v503 = vld [vmem:[%s365 + $0x68] sm:$0xff]
        %v504 = vld [vmem:[%s365 + $0x78] sm:$0xff]
        %v505 = vld [vmem:[%s365 + $0x80] sm:$0xff]
        %v506 = vld [vmem:[%s365 + $0x90] sm:$0xff]
        %v507 = vld [vmem:[%s365 + $0x98] sm:$0xff]
        %v508 = vld [vmem:[%s365 + $0xa8] sm:$0xff]
        %v509 = vld [vmem:[%s365 + $0xb0] sm:$0xff]
        %v510 = vld [vmem:[%s365 + $0xc0] sm:$0xff]
        %v511 = vld [vmem:[%s365 + $0xc8] sm:$0xff]
        %v512 = vld [vmem:[%s365 + $0xd8] sm:$0xff]
        %v513 = vld [vmem:[%s365 + $0xe0] sm:$0xff]
        %v514 = vld [vmem:[%s365 + $0xf0] sm:$0xff]
        %v515 = vld [vmem:[%s365 + $0xf8] sm:$0xff]
        %v516 = vld [vmem:[%s365 + $0x108] sm:$0xff]
        %v517 = vld [vmem:[%s365 + $0x110] sm:$0xff]
        %v518 = vld [vmem:[%s365 + $0x120] sm:$0xff]
        %v519 = vld [vmem:[%s365 + $0x128] sm:$0xff]
        %v520 = vld [vmem:[%s365 + $0x138] sm:$0xff]
        %v521 = vld [vmem:[%s365 + $0x140] sm:$0xff]
        %v522 = vld [vmem:[%s365 + $0x150] sm:$0xff]
        %v523 = vld [vmem:[%s365 + $0x158] sm:$0xff]
        %v524 = vld [vmem:[%s365 + $0x168] sm:$0xff]
        %v525 = vld [vmem:[%s365 + $0x170] sm:$0xff]
        %v526 = vld [vmem:[%s365 + $0x1] sm:$0xff]
        %v527 = vld [vmem:[%s365 + $0x9] sm:$0xff]
        %v528 = vld [vmem:[%s365 + $0x19] sm:$0xff]
        %v529 = vld [vmem:[%s365 + $0x21] sm:$0xff]
        %v530 = vld [vmem:[%s365 + $0x31] sm:$0xff]
        %v531 = vld [vmem:[%s365 + $0x39] sm:$0xff]
        %v532 = vld [vmem:[%s365 + $0x49] sm:$0xff]
        %v533 = vld [vmem:[%s365 + $0x51] sm:$0xff]
        %v534 = vld [vmem:[%s365 + $0x61] sm:$0xff]
        %v535 = vld [vmem:[%s365 + $0x69] sm:$0xff]
        %v536 = vld [vmem:[%s365 + $0x79] sm:$0xff]
        %v537 = vld [vmem:[%s365 + $0x81] sm:$0xff]
        %v538 = vld [vmem:[%s365 + $0x91] sm:$0xff]
        %v539 = vld [vmem:[%s365 + $0x99] sm:$0xff]
        %v540 = vld [vmem:[%s365 + $0xa9] sm:$0xff]
        %v541 = vld [vmem:[%s365 + $0xb1] sm:$0xff]
        %v542 = vld [vmem:[%s365 + $0xc1] sm:$0xff]
        %v543 = vld [vmem:[%s365 + $0xc9] sm:$0xff]
        %v544 = vld [vmem:[%s365 + $0xd9] sm:$0xff]
        %v545 = vld [vmem:[%s365 + $0xe1] sm:$0xff]
        %v546 = vld [vmem:[%s365 + $0xf1] sm:$0xff]
        %v547 = vld [vmem:[%s365 + $0xf9] sm:$0xff]
        %v548 = vld [vmem:[%s365 + $0x109] sm:$0xff]
        %v549 = vld [vmem:[%s365 + $0x111] sm:$0xff]
        %v550 = vld [vmem:[%s365 + $0x121] sm:$0xff]
        %v551 = vld [vmem:[%s365 + $0x129] sm:$0xff]
        %v552 = vld [vmem:[%s365 + $0x139] sm:$0xff]
        %v553 = vld [vmem:[%s365 + $0x141] sm:$0xff]
        %v554 = vld [vmem:[%s365 + $0x151] sm:$0xff]
        %v555 = vld [vmem:[%s365 + $0x159] sm:$0xff]
        %v556 = vld [vmem:[%s365 + $0x169] sm:$0xff]
        %v557 = vld [vmem:[%s365 + $0x171] sm:$0xff]
        %v558 = vld [vmem:[%s365 + $0x2] sm:$0xff]
        %v559 = vld [vmem:[%s365 + $0xa] sm:$0xff]
        %v560 = vld [vmem:[%s365 + $0x1a] sm:$0xff]
        %v561 = vld [vmem:[%s365 + $0x22] sm:$0xff]
        %v562 = vld [vmem:[%s365 + $0x32] sm:$0xff]
        %v563 = vld [vmem:[%s365 + $0x3a] sm:$0xff]
        %v564 = vld [vmem:[%s365 + $0x4a] sm:$0xff]
        %v565 = vld [vmem:[%s365 + $0x52] sm:$0xff]
        %v566 = vld [vmem:[%s365 + $0x62] sm:$0xff]
        %v567 = vld [vmem:[%s365 + $0x6a] sm:$0xff]
        %v568 = vld [vmem:[%s365 + $0x7a] sm:$0xff]
        %v569 = vld [vmem:[%s365 + $0x82] sm:$0xff]
        %v570 = vld [vmem:[%s365 + $0x92] sm:$0xff]
        %v571 = vld [vmem:[%s365 + $0x9a] sm:$0xff]
        %v572 = vld [vmem:[%s365 + $0xaa] sm:$0xff]
        %v573 = vld [vmem:[%s365 + $0xb2] sm:$0xff]
        %v574 = vld [vmem:[%s365 + $0xc2] sm:$0xff]
        %v575 = vld [vmem:[%s365 + $0xca] sm:$0xff]
        %v576 = vld [vmem:[%s365 + $0xda] sm:$0xff]
        %v577 = vld [vmem:[%s365 + $0xe2] sm:$0xff]
        %v578 = vld [vmem:[%s365 + $0xf2] sm:$0xff]
        %v579 = vld [vmem:[%s365 + $0xfa] sm:$0xff]
        %v580 = vld [vmem:[%s365 + $0x10a] sm:$0xff]
        %v581 = vld [vmem:[%s365 + $0x112] sm:$0xff]
        %v582 = vld [vmem:[%s365 + $0x122] sm:$0xff]
        %v583 = vld [vmem:[%s365 + $0x12a] sm:$0xff]
        %v584 = vld [vmem:[%s365 + $0x13a] sm:$0xff]
        %v585 = vld [vmem:[%s365 + $0x142] sm:$0xff]
        %v586 = vld [vmem:[%s365 + $0x152] sm:$0xff]
        %v587 = vld [vmem:[%s365 + $0x15a] sm:$0xff]
        %v588 = vld [vmem:[%s365 + $0x16a] sm:$0xff]
        %v589 = vld [vmem:[%s365 + $0x172] sm:$0xff]
        %s590 = scalar_lea.vmem [#allocation2], 48
        %v591 = vld [vmem:[%s590] sm:$0xff]
        %v592 = vld [vmem:[%s590 + $0x8] sm:$0xff]
        %v593 = vld [vmem:[%s590 + $0x18] sm:$0xff]
        %v594 = vld [vmem:[%s590 + $0x20] sm:$0xff]
        %v595 = vld [vmem:[%s590 + $0x30] sm:$0xff]
        %v596 = vld [vmem:[%s590 + $0x38] sm:$0xff]
        %v597 = vld [vmem:[%s590 + $0x48] sm:$0xff]
        %v598 = vld [vmem:[%s590 + $0x50] sm:$0xff]
        %v599 = vld [vmem:[%s590 + $0x60] sm:$0xff]
        %v600 = vld [vmem:[%s590 + $0x68] sm:$0xff]
        %v601 = vld [vmem:[%s590 + $0x78] sm:$0xff]
        %v602 = vld [vmem:[%s590 + $0x80] sm:$0xff]
        %v603 = vld [vmem:[%s590 + $0x90] sm:$0xff]
        %v604 = vld [vmem:[%s590 + $0x98] sm:$0xff]
        %v605 = vld [vmem:[%s590 + $0xa8] sm:$0xff]
        %v606 = vld [vmem:[%s590 + $0xb0] sm:$0xff]
        %v607 = vld [vmem:[%s590 + $0xc0] sm:$0xff]
        %v608 = vld [vmem:[%s590 + $0xc8] sm:$0xff]
        %v609 = vld [vmem:[%s590 + $0xd8] sm:$0xff]
        %v610 = vld [vmem:[%s590 + $0xe0] sm:$0xff]
        %v611 = vld [vmem:[%s590 + $0xf0] sm:$0xff]
        %v612 = vld [vmem:[%s590 + $0xf8] sm:$0xff]
        %v613 = vld [vmem:[%s590 + $0x108] sm:$0xff]
        %v614 = vld [vmem:[%s590 + $0x110] sm:$0xff]
        %v615 = vld [vmem:[%s590 + $0x120] sm:$0xff]
        %v616 = vld [vmem:[%s590 + $0x128] sm:$0xff]
        %v617 = vld [vmem:[%s590 + $0x138] sm:$0xff]
        %v618 = vld [vmem:[%s590 + $0x140] sm:$0xff]
        %v619 = vld [vmem:[%s590 + $0x150] sm:$0xff]
        %v620 = vld [vmem:[%s590 + $0x158] sm:$0xff]
        %v621 = vld [vmem:[%s590 + $0x168] sm:$0xff]
        %v622 = vld [vmem:[%s590 + $0x170] sm:$0xff]
        %v623 = vld [vmem:[%s590 + $0x1] sm:$0xff]
        %v624 = vld [vmem:[%s590 + $0x9] sm:$0xff]
        %v625 = vld [vmem:[%s590 + $0x19] sm:$0xff]
        %v626 = vld [vmem:[%s590 + $0x21] sm:$0xff]
        %v627 = vld [vmem:[%s590 + $0x31] sm:$0xff]
        %v628 = vld [vmem:[%s590 + $0x39] sm:$0xff]
        %v629 = vld [vmem:[%s590 + $0x49] sm:$0xff]
        %v630 = vld [vmem:[%s590 + $0x51] sm:$0xff]
        %v631 = vld [vmem:[%s590 + $0x61] sm:$0xff]
        %v632 = vld [vmem:[%s590 + $0x69] sm:$0xff]
        %v633 = vld [vmem:[%s590 + $0x79] sm:$0xff]
        %v634 = vld [vmem:[%s590 + $0x81] sm:$0xff]
        %v635 = vld [vmem:[%s590 + $0x91] sm:$0xff]
        %v636 = vld [vmem:[%s590 + $0x99] sm:$0xff]
        %v637 = vld [vmem:[%s590 + $0xa9] sm:$0xff]
        %v638 = vld [vmem:[%s590 + $0xb1] sm:$0xff]
        %v639 = vld [vmem:[%s590 + $0xc1] sm:$0xff]
        %v640 = vld [vmem:[%s590 + $0xc9] sm:$0xff]
        %v641 = vld [vmem:[%s590 + $0xd9] sm:$0xff]
        %v642 = vld [vmem:[%s590 + $0xe1] sm:$0xff]
        %v643 = vld [vmem:[%s590 + $0xf1] sm:$0xff]
        %v644 = vld [vmem:[%s590 + $0xf9] sm:$0xff]
        %v645 = vld [vmem:[%s590 + $0x109] sm:$0xff]
        %v646 = vld [vmem:[%s590 + $0x111] sm:$0xff]
        %v647 = vld [vmem:[%s590 + $0x121] sm:$0xff]
        %v648 = vld [vmem:[%s590 + $0x129] sm:$0xff]
        %v649 = vld [vmem:[%s590 + $0x139] sm:$0xff]
        %v650 = vld [vmem:[%s590 + $0x141] sm:$0xff]
        %v651 = vld [vmem:[%s590 + $0x151] sm:$0xff]
        %v652 = vld [vmem:[%s590 + $0x159] sm:$0xff]
        %v653 = vld [vmem:[%s590 + $0x169] sm:$0xff]
        %v654 = vld [vmem:[%s590 + $0x171] sm:$0xff]
        %v655 = vld [vmem:[%s590 + $0x2] sm:$0xff]
        %v656 = vld [vmem:[%s590 + $0xa] sm:$0xff]
        %v657 = vld [vmem:[%s590 + $0x1a] sm:$0xff]
        %v658 = vld [vmem:[%s590 + $0x22] sm:$0xff]
        %v659 = vld [vmem:[%s590 + $0x32] sm:$0xff]
        %v660 = vld [vmem:[%s590 + $0x3a] sm:$0xff]
        %v661 = vld [vmem:[%s590 + $0x4a] sm:$0xff]
        %v662 = vld [vmem:[%s590 + $0x52] sm:$0xff]
        %v663 = vld [vmem:[%s590 + $0x62] sm:$0xff]
        %v664 = vld [vmem:[%s590 + $0x6a] sm:$0xff]
        %v665 = vld [vmem:[%s590 + $0x7a] sm:$0xff]
        %v666 = vld [vmem:[%s590 + $0x82] sm:$0xff]
        %v667 = vld [vmem:[%s590 + $0x92] sm:$0xff]
        %v668 = vld [vmem:[%s590 + $0x9a] sm:$0xff]
        %v669 = vld [vmem:[%s590 + $0xaa] sm:$0xff]
        %v670 = vld [vmem:[%s590 + $0xb2] sm:$0xff]
        %v671 = vld [vmem:[%s590 + $0xc2] sm:$0xff]
        %v672 = vld [vmem:[%s590 + $0xca] sm:$0xff]
        %v673 = vld [vmem:[%s590 + $0xda] sm:$0xff]
        %v674 = vld [vmem:[%s590 + $0xe2] sm:$0xff]
        %v675 = vld [vmem:[%s590 + $0xf2] sm:$0xff]
        %v676 = vld [vmem:[%s590 + $0xfa] sm:$0xff]
        %v677 = vld [vmem:[%s590 + $0x10a] sm:$0xff]
        %v678 = vld [vmem:[%s590 + $0x112] sm:$0xff]
        %v679 = vld [vmem:[%s590 + $0x122] sm:$0xff]
        %v680 = vld [vmem:[%s590 + $0x12a] sm:$0xff]
        %v681 = vld [vmem:[%s590 + $0x13a] sm:$0xff]
        %v682 = vld [vmem:[%s590 + $0x142] sm:$0xff]
        %v683 = vld [vmem:[%s590 + $0x152] sm:$0xff]
        %v684 = vld [vmem:[%s590 + $0x15a] sm:$0xff]
        %v685 = vld [vmem:[%s590 + $0x16a] sm:$0xff]
        %v686 = vld [vmem:[%s590 + $0x172] sm:$0xff]
        %719 = vrot.lane.b32.xlu0 %v430, 4
        %v720 = vpop.permute.xlu0 %719
        %721 = vrot.lane.b32.xlu0 %v431, 4
        %v722 = vpop.permute.xlu0 %721
        %723 = vrot.lane.b32.xlu0 %v432, 4
        %v724 = vpop.permute.xlu0 %723
        %725 = vrot.lane.b32.xlu0 %v433, 4
        %v726 = vpop.permute.xlu0 %725
        %727 = vrot.lane.b32.xlu0 %v434, 4
        %v728 = vpop.permute.xlu0 %727
        %729 = vrot.lane.b32.xlu0 %v435, 4
        %v730 = vpop.permute.xlu0 %729
        %731 = vrot.lane.b32.xlu0 %v436, 4
        %v732 = vpop.permute.xlu0 %731
        %733 = vrot.lane.b32.xlu0 %v437, 4
        %v734 = vpop.permute.xlu0 %733
        %735 = vrot.lane.b32.xlu0 %v438, 4
        %v736 = vpop.permute.xlu0 %735
        %737 = vrot.lane.b32.xlu0 %v439, 4
        %v738 = vpop.permute.xlu0 %737
        %739 = vrot.lane.b32.xlu0 %v440, 4
        %v740 = vpop.permute.xlu0 %739
        %741 = vrot.lane.b32.xlu0 %v441, 4
        %v742 = vpop.permute.xlu0 %741
        %743 = vrot.lane.b32.xlu0 %v442, 4
        %v744 = vpop.permute.xlu0 %743
        %745 = vrot.lane.b32.xlu0 %v443, 4
        %v746 = vpop.permute.xlu0 %745
        %747 = vrot.lane.b32.xlu0 %v444, 4
        %v748 = vpop.permute.xlu0 %747
        %749 = vrot.lane.b32.xlu0 %v445, 4
        %v750 = vpop.permute.xlu0 %749
        %751 = vrot.lane.b32.xlu0 %v446, 4
        %v752 = vpop.permute.xlu0 %751
        %753 = vrot.lane.b32.xlu0 %v447, 4
        %v754 = vpop.permute.xlu0 %753
        %755 = vrot.lane.b32.xlu0 %v448, 4
        %v756 = vpop.permute.xlu0 %755
        %757 = vrot.lane.b32.xlu0 %v449, 4
        %v758 = vpop.permute.xlu0 %757
        %759 = vrot.lane.b32.xlu0 %v450, 4
        %v760 = vpop.permute.xlu0 %759
        %761 = vrot.lane.b32.xlu0 %v451, 4
        %v762 = vpop.permute.xlu0 %761
        %763 = vrot.lane.b32.xlu0 %v452, 4
        %v764 = vpop.permute.xlu0 %763
        %765 = vrot.lane.b32.xlu0 %v453, 4
        %v766 = vpop.permute.xlu0 %765
        %767 = vrot.lane.b32.xlu0 %v454, 4
        %v768 = vpop.permute.xlu0 %767
        %769 = vrot.lane.b32.xlu0 %v455, 4
        %v770 = vpop.permute.xlu0 %769
        %771 = vrot.lane.b32.xlu0 %v456, 4
        %v772 = vpop.permute.xlu0 %771
        %773 = vrot.lane.b32.xlu0 %v457, 4
        %v774 = vpop.permute.xlu0 %773
        %775 = vrot.lane.b32.xlu0 %v458, 4
        %v776 = vpop.permute.xlu0 %775
        %777 = vrot.lane.b32.xlu0 %v459, 4
        %v778 = vpop.permute.xlu0 %777
        %779 = vrot.lane.b32.xlu0 %v460, 4
        %v780 = vpop.permute.xlu0 %779
        %781 = vrot.lane.b32.xlu0 %v461, 4
        %v782 = vpop.permute.xlu0 %781
        %847 = vrot.lane.b32.xlu0 %v462, 8
        %v848 = vpop.permute.xlu0 %847
        %849 = vrot.lane.b32.xlu0 %v463, 8
        %v850 = vpop.permute.xlu0 %849
        %851 = vrot.lane.b32.xlu0 %v464, 8
        %v852 = vpop.permute.xlu0 %851
        %853 = vrot.lane.b32.xlu0 %v465, 8
        %v854 = vpop.permute.xlu0 %853
        %855 = vrot.lane.b32.xlu0 %v466, 8
        %v856 = vpop.permute.xlu0 %855
        %857 = vrot.lane.b32.xlu0 %v467, 8
        %v858 = vpop.permute.xlu0 %857
        %859 = vrot.lane.b32.xlu0 %v468, 8
        %v860 = vpop.permute.xlu0 %859
        %861 = vrot.lane.b32.xlu0 %v469, 8
        %v862 = vpop.permute.xlu0 %861
        %863 = vrot.lane.b32.xlu0 %v470, 8
        %v864 = vpop.permute.xlu0 %863
        %865 = vrot.lane.b32.xlu0 %v471, 8
        %v866 = vpop.permute.xlu0 %865
        %867 = vrot.lane.b32.xlu0 %v472, 8
        %v868 = vpop.permute.xlu0 %867
        %869 = vrot.lane.b32.xlu0 %v473, 8
        %v870 = vpop.permute.xlu0 %869
        %871 = vrot.lane.b32.xlu0 %v474, 8
        %v872 = vpop.permute.xlu0 %871
        %873 = vrot.lane.b32.xlu0 %v475, 8
        %v874 = vpop.permute.xlu0 %873
        %875 = vrot.lane.b32.xlu0 %v476, 8
        %v876 = vpop.permute.xlu0 %875
        %877 = vrot.lane.b32.xlu0 %v477, 8
        %v878 = vpop.permute.xlu0 %877
        %879 = vrot.lane.b32.xlu0 %v478, 8
        %v880 = vpop.permute.xlu0 %879
        %881 = vrot.lane.b32.xlu0 %v479, 8
        %v882 = vpop.permute.xlu0 %881
        %883 = vrot.lane.b32.xlu0 %v480, 8
        %v884 = vpop.permute.xlu0 %883
        %885 = vrot.lane.b32.xlu0 %v481, 8
        %v886 = vpop.permute.xlu0 %885
        %887 = vrot.lane.b32.xlu0 %v482, 8
        %v888 = vpop.permute.xlu0 %887
        %889 = vrot.lane.b32.xlu0 %v483, 8
        %v890 = vpop.permute.xlu0 %889
        %891 = vrot.lane.b32.xlu0 %v484, 8
        %v892 = vpop.permute.xlu0 %891
        %893 = vrot.lane.b32.xlu0 %v485, 8
        %v894 = vpop.permute.xlu0 %893
        %895 = vrot.lane.b32.xlu0 %v486, 8
        %v896 = vpop.permute.xlu0 %895
        %897 = vrot.lane.b32.xlu0 %v487, 8
        %v898 = vpop.permute.xlu0 %897
        %899 = vrot.lane.b32.xlu0 %v488, 8
        %v900 = vpop.permute.xlu0 %899
        %901 = vrot.lane.b32.xlu0 %v489, 8
        %v902 = vpop.permute.xlu0 %901
        %903 = vrot.lane.b32.xlu0 %v490, 8
        %v904 = vpop.permute.xlu0 %903
        %905 = vrot.lane.b32.xlu0 %v491, 8
        %v906 = vpop.permute.xlu0 %905
        %907 = vrot.lane.b32.xlu0 %v492, 8
        %v908 = vpop.permute.xlu0 %907
        %909 = vrot.lane.b32.xlu0 %v493, 8
        %v910 = vpop.permute.xlu0 %909
        %975 = vrot.lane.b32.xlu0 %v494, 12
        %v976 = vpop.permute.xlu0 %975
        %977 = vrot.lane.b32.xlu0 %v495, 12
        %v978 = vpop.permute.xlu0 %977
        %979 = vrot.lane.b32.xlu0 %v496, 12
        %v980 = vpop.permute.xlu0 %979
        %981 = vrot.lane.b32.xlu0 %v497, 12
        %v982 = vpop.permute.xlu0 %981
        %983 = vrot.lane.b32.xlu0 %v498, 12
        %v984 = vpop.permute.xlu0 %983
        %985 = vrot.lane.b32.xlu0 %v499, 12
        %v986 = vpop.permute.xlu0 %985
        %987 = vrot.lane.b32.xlu0 %v500, 12
        %v988 = vpop.permute.xlu0 %987
        %989 = vrot.lane.b32.xlu0 %v501, 12
        %v990 = vpop.permute.xlu0 %989
        %991 = vrot.lane.b32.xlu0 %v502, 12
        %v992 = vpop.permute.xlu0 %991
        %993 = vrot.lane.b32.xlu0 %v503, 12
        %v994 = vpop.permute.xlu0 %993
        %995 = vrot.lane.b32.xlu0 %v504, 12
        %v996 = vpop.permute.xlu0 %995
        %997 = vrot.lane.b32.xlu0 %v505, 12
        %v998 = vpop.permute.xlu0 %997
        %999 = vrot.lane.b32.xlu0 %v506, 12
        %v1000 = vpop.permute.xlu0 %999
        %1001 = vrot.lane.b32.xlu0 %v507, 12
        %v1002 = vpop.permute.xlu0 %1001
        %1003 = vrot.lane.b32.xlu0 %v508, 12
        %v1004 = vpop.permute.xlu0 %1003
        %1005 = vrot.lane.b32.xlu0 %v509, 12
        %v1006 = vpop.permute.xlu0 %1005
        %1007 = vrot.lane.b32.xlu0 %v510, 12
        %v1008 = vpop.permute.xlu0 %1007
        %1009 = vrot.lane.b32.xlu0 %v511, 12
        %v1010 = vpop.permute.xlu0 %1009
        %1011 = vrot.lane.b32.xlu0 %v512, 12
        %v1012 = vpop.permute.xlu0 %1011
        %1013 = vrot.lane.b32.xlu0 %v513, 12
        %v1014 = vpop.permute.xlu0 %1013
        %1015 = vrot.lane.b32.xlu0 %v514, 12
        %v1016 = vpop.permute.xlu0 %1015
        %1017 = vrot.lane.b32.xlu0 %v515, 12
        %v1018 = vpop.permute.xlu0 %1017
        %1019 = vrot.lane.b32.xlu0 %v516, 12
        %v1020 = vpop.permute.xlu0 %1019
        %1021 = vrot.lane.b32.xlu0 %v517, 12
        %v1022 = vpop.permute.xlu0 %1021
        %1023 = vrot.lane.b32.xlu0 %v518, 12
        %v1024 = vpop.permute.xlu0 %1023
        %1025 = vrot.lane.b32.xlu0 %v519, 12
        %v1026 = vpop.permute.xlu0 %1025
        %1027 = vrot.lane.b32.xlu0 %v520, 12
        %v1028 = vpop.permute.xlu0 %1027
        %1029 = vrot.lane.b32.xlu0 %v521, 12
        %v1030 = vpop.permute.xlu0 %1029
        %1031 = vrot.lane.b32.xlu0 %v522, 12
        %v1032 = vpop.permute.xlu0 %1031
        %1033 = vrot.lane.b32.xlu0 %v523, 12
        %v1034 = vpop.permute.xlu0 %1033
        %1035 = vrot.lane.b32.xlu0 %v524, 12
        %v1036 = vpop.permute.xlu0 %1035
        %1037 = vrot.lane.b32.xlu0 %v525, 12
        %v1038 = vpop.permute.xlu0 %1037
        %1103 = vrot.lane.b32.xlu0 %v526, 16
        %v1104 = vpop.permute.xlu0 %1103
        %1105 = vrot.lane.b32.xlu0 %v527, 16
        %v1106 = vpop.permute.xlu0 %1105
        %1107 = vrot.lane.b32.xlu0 %v528, 16
        %v1108 = vpop.permute.xlu0 %1107
        %1109 = vrot.lane.b32.xlu0 %v529, 16
        %v1110 = vpop.permute.xlu0 %1109
        %1111 = vrot.lane.b32.xlu0 %v530, 16
        %v1112 = vpop.permute.xlu0 %1111
        %1113 = vrot.lane.b32.xlu0 %v531, 16
        %v1114 = vpop.permute.xlu0 %1113
        %1115 = vrot.lane.b32.xlu0 %v532, 16
        %v1116 = vpop.permute.xlu0 %1115
        %1117 = vrot.lane.b32.xlu0 %v533, 16
        %v1118 = vpop.permute.xlu0 %1117
        %1119 = vrot.lane.b32.xlu0 %v534, 16
        %v1120 = vpop.permute.xlu0 %1119
        %1121 = vrot.lane.b32.xlu0 %v535, 16
        %v1122 = vpop.permute.xlu0 %1121
        %1123 = vrot.lane.b32.xlu0 %v536, 16
        %v1124 = vpop.permute.xlu0 %1123
        %1125 = vrot.lane.b32.xlu0 %v537, 16
        %v1126 = vpop.permute.xlu0 %1125
        %1127 = vrot.lane.b32.xlu0 %v538, 16
        %v1128 = vpop.permute.xlu0 %1127
        %1129 = vrot.lane.b32.xlu0 %v539, 16
        %v1130 = vpop.permute.xlu0 %1129
        %1131 = vrot.lane.b32.xlu0 %v540, 16
        %v1132 = vpop.permute.xlu0 %1131
        %1133 = vrot.lane.b32.xlu0 %v541, 16
        %v1134 = vpop.permute.xlu0 %1133
        %1135 = vrot.lane.b32.xlu0 %v542, 16
        %v1136 = vpop.permute.xlu0 %1135
        %1137 = vrot.lane.b32.xlu0 %v543, 16
        %v1138 = vpop.permute.xlu0 %1137
        %1139 = vrot.lane.b32.xlu0 %v544, 16
        %v1140 = vpop.permute.xlu0 %1139
        %1141 = vrot.lane.b32.xlu0 %v545, 16
        %v1142 = vpop.permute.xlu0 %1141
        %1143 = vrot.lane.b32.xlu0 %v546, 16
        %v1144 = vpop.permute.xlu0 %1143
        %1145 = vrot.lane.b32.xlu0 %v547, 16
        %v1146 = vpop.permute.xlu0 %1145
        %1147 = vrot.lane.b32.xlu0 %v548, 16
        %v1148 = vpop.permute.xlu0 %1147
        %1149 = vrot.lane.b32.xlu0 %v549, 16
        %v1150 = vpop.permute.xlu0 %1149
        %1151 = vrot.lane.b32.xlu0 %v550, 16
        %v1152 = vpop.permute.xlu0 %1151
        %1153 = vrot.lane.b32.xlu0 %v551, 16
        %v1154 = vpop.permute.xlu0 %1153
        %1155 = vrot.lane.b32.xlu0 %v552, 16
        %v1156 = vpop.permute.xlu0 %1155
        %1157 = vrot.lane.b32.xlu0 %v553, 16
        %v1158 = vpop.permute.xlu0 %1157
        %1159 = vrot.lane.b32.xlu0 %v554, 16
        %v1160 = vpop.permute.xlu0 %1159
        %1161 = vrot.lane.b32.xlu0 %v555, 16
        %v1162 = vpop.permute.xlu0 %1161
        %1163 = vrot.lane.b32.xlu0 %v556, 16
        %v1164 = vpop.permute.xlu0 %1163
        %1165 = vrot.lane.b32.xlu0 %v557, 16
        %v1166 = vpop.permute.xlu0 %1165
        %1231 = vrot.lane.b32.xlu0 %v558, 20
        %v1232 = vpop.permute.xlu0 %1231
        %1233 = vrot.lane.b32.xlu0 %v559, 20
        %v1234 = vpop.permute.xlu0 %1233
        %1235 = vrot.lane.b32.xlu0 %v560, 20
        %v1236 = vpop.permute.xlu0 %1235
        %1237 = vrot.lane.b32.xlu0 %v561, 20
        %v1238 = vpop.permute.xlu0 %1237
        %1239 = vrot.lane.b32.xlu0 %v562, 20
        %v1240 = vpop.permute.xlu0 %1239
        %1241 = vrot.lane.b32.xlu0 %v563, 20
        %v1242 = vpop.permute.xlu0 %1241
        %1243 = vrot.lane.b32.xlu0 %v564, 20
        %v1244 = vpop.permute.xlu0 %1243
        %1245 = vrot.lane.b32.xlu0 %v565, 20
        %v1246 = vpop.permute.xlu0 %1245
        %1247 = vrot.lane.b32.xlu0 %v566, 20
        %v1248 = vpop.permute.xlu0 %1247
        %1249 = vrot.lane.b32.xlu0 %v567, 20
        %v1250 = vpop.permute.xlu0 %1249
        %1251 = vrot.lane.b32.xlu0 %v568, 20
        %v1252 = vpop.permute.xlu0 %1251
        %1253 = vrot.lane.b32.xlu0 %v569, 20
        %v1254 = vpop.permute.xlu0 %1253
        %1255 = vrot.lane.b32.xlu0 %v570, 20
        %v1256 = vpop.permute.xlu0 %1255
        %1257 = vrot.lane.b32.xlu0 %v571, 20
        %v1258 = vpop.permute.xlu0 %1257
        %1259 = vrot.lane.b32.xlu0 %v572, 20
        %v1260 = vpop.permute.xlu0 %1259
        %1261 = vrot.lane.b32.xlu0 %v573, 20
        %v1262 = vpop.permute.xlu0 %1261
        %1263 = vrot.lane.b32.xlu0 %v574, 20
        %v1264 = vpop.permute.xlu0 %1263
        %1265 = vrot.lane.b32.xlu0 %v575, 20
        %v1266 = vpop.permute.xlu0 %1265
        %1267 = vrot.lane.b32.xlu0 %v576, 20
        %v1268 = vpop.permute.xlu0 %1267
        %1269 = vrot.lane.b32.xlu0 %v577, 20
        %v1270 = vpop.permute.xlu0 %1269
        %1271 = vrot.lane.b32.xlu0 %v578, 20
        %v1272 = vpop.permute.xlu0 %1271
        %1273 = vrot.lane.b32.xlu0 %v579, 20
        %v1274 = vpop.permute.xlu0 %1273
        %1275 = vrot.lane.b32.xlu0 %v580, 20
        %v1276 = vpop.permute.xlu0 %1275
        %1277 = vrot.lane.b32.xlu0 %v581, 20
        %v1278 = vpop.permute.xlu0 %1277
        %1279 = vrot.lane.b32.xlu0 %v582, 20
        %v1280 = vpop.permute.xlu0 %1279
        %1281 = vrot.lane.b32.xlu0 %v583, 20
        %v1282 = vpop.permute.xlu0 %1281
        %1283 = vrot.lane.b32.xlu0 %v584, 20
        %v1284 = vpop.permute.xlu0 %1283
        %1285 = vrot.lane.b32.xlu0 %v585, 20
        %v1286 = vpop.permute.xlu0 %1285
        %1287 = vrot.lane.b32.xlu0 %v586, 20
        %v1288 = vpop.permute.xlu0 %1287
        %1289 = vrot.lane.b32.xlu0 %v587, 20
        %v1290 = vpop.permute.xlu0 %1289
        %1291 = vrot.lane.b32.xlu0 %v588, 20
        %v1292 = vpop.permute.xlu0 %1291
        %1293 = vrot.lane.b32.xlu0 %v589, 20
        %v1294 = vpop.permute.xlu0 %1293
        %1359 = vrot.lane.b32.xlu0 %v591, 24
        %v1360 = vpop.permute.xlu0 %1359
        %1361 = vrot.lane.b32.xlu0 %v592, 24
        %v1362 = vpop.permute.xlu0 %1361
        %1363 = vrot.lane.b32.xlu0 %v593, 24
        %v1364 = vpop.permute.xlu0 %1363
        %1365 = vrot.lane.b32.xlu0 %v594, 24
        %v1366 = vpop.permute.xlu0 %1365
        %1367 = vrot.lane.b32.xlu0 %v595, 24
        %v1368 = vpop.permute.xlu0 %1367
        %1369 = vrot.lane.b32.xlu0 %v596, 24
        %v1370 = vpop.permute.xlu0 %1369
        %1371 = vrot.lane.b32.xlu0 %v597, 24
        %v1372 = vpop.permute.xlu0 %1371
        %1373 = vrot.lane.b32.xlu0 %v598, 24
        %v1374 = vpop.permute.xlu0 %1373
        %1375 = vrot.lane.b32.xlu0 %v599, 24
        %v1376 = vpop.permute.xlu0 %1375
        %1377 = vrot.lane.b32.xlu0 %v600, 24
        %v1378 = vpop.permute.xlu0 %1377
        %1379 = vrot.lane.b32.xlu0 %v601, 24
        %v1380 = vpop.permute.xlu0 %1379
        %1381 = vrot.lane.b32.xlu0 %v602, 24
        %v1382 = vpop.permute.xlu0 %1381
        %1383 = vrot.lane.b32.xlu0 %v603, 24
        %v1384 = vpop.permute.xlu0 %1383
        %1385 = vrot.lane.b32.xlu0 %v604, 24
        %v1386 = vpop.permute.xlu0 %1385
        %1387 = vrot.lane.b32.xlu0 %v605, 24
        %v1388 = vpop.permute.xlu0 %1387
        %1389 = vrot.lane.b32.xlu0 %v606, 24
        %v1390 = vpop.permute.xlu0 %1389
        %1391 = vrot.lane.b32.xlu0 %v607, 24
        %v1392 = vpop.permute.xlu0 %1391
        %1393 = vrot.lane.b32.xlu0 %v608, 24
        %v1394 = vpop.permute.xlu0 %1393
        %1395 = vrot.lane.b32.xlu0 %v609, 24
        %v1396 = vpop.permute.xlu0 %1395
        %1397 = vrot.lane.b32.xlu0 %v610, 24
        %v1398 = vpop.permute.xlu0 %1397
        %1399 = vrot.lane.b32.xlu0 %v611, 24
        %v1400 = vpop.permute.xlu0 %1399
        %1401 = vrot.lane.b32.xlu0 %v612, 24
        %v1402 = vpop.permute.xlu0 %1401
        %1403 = vrot.lane.b32.xlu0 %v613, 24
        %v1404 = vpop.permute.xlu0 %1403
        %1405 = vrot.lane.b32.xlu0 %v614, 24
        %v1406 = vpop.permute.xlu0 %1405
        %1407 = vrot.lane.b32.xlu0 %v615, 24
        %v1408 = vpop.permute.xlu0 %1407
        %1409 = vrot.lane.b32.xlu0 %v616, 24
        %v1410 = vpop.permute.xlu0 %1409
        %1411 = vrot.lane.b32.xlu0 %v617, 24
        %v1412 = vpop.permute.xlu0 %1411
        %1413 = vrot.lane.b32.xlu0 %v618, 24
        %v1414 = vpop.permute.xlu0 %1413
        %1415 = vrot.lane.b32.xlu0 %v619, 24
        %v1416 = vpop.permute.xlu0 %1415
        %1417 = vrot.lane.b32.xlu0 %v620, 24
        %v1418 = vpop.permute.xlu0 %1417
        %1419 = vrot.lane.b32.xlu0 %v621, 24
        %v1420 = vpop.permute.xlu0 %1419
        %1421 = vrot.lane.b32.xlu0 %v622, 24
        %v1422 = vpop.permute.xlu0 %1421
        %1487 = vrot.lane.b32.xlu0 %v623, 28
        %v1488 = vpop.permute.xlu0 %1487
        %1489 = vrot.lane.b32.xlu0 %v624, 28
        %v1490 = vpop.permute.xlu0 %1489
        %1491 = vrot.lane.b32.xlu0 %v625, 28
        %v1492 = vpop.permute.xlu0 %1491
        %1493 = vrot.lane.b32.xlu0 %v626, 28
        %v1494 = vpop.permute.xlu0 %1493
        %1495 = vrot.lane.b32.xlu0 %v627, 28
        %v1496 = vpop.permute.xlu0 %1495
        %1497 = vrot.lane.b32.xlu0 %v628, 28
        %v1498 = vpop.permute.xlu0 %1497
        %1499 = vrot.lane.b32.xlu0 %v629, 28
        %v1500 = vpop.permute.xlu0 %1499
        %1501 = vrot.lane.b32.xlu0 %v630, 28
        %v1502 = vpop.permute.xlu0 %1501
        %1503 = vrot.lane.b32.xlu0 %v631, 28
        %v1504 = vpop.permute.xlu0 %1503
        %1505 = vrot.lane.b32.xlu0 %v632, 28
        %v1506 = vpop.permute.xlu0 %1505
        %1507 = vrot.lane.b32.xlu0 %v633, 28
        %v1508 = vpop.permute.xlu0 %1507
        %1509 = vrot.lane.b32.xlu0 %v634, 28
        %v1510 = vpop.permute.xlu0 %1509
        %1511 = vrot.lane.b32.xlu0 %v635, 28
        %v1512 = vpop.permute.xlu0 %1511
        %1513 = vrot.lane.b32.xlu0 %v636, 28
        %v1514 = vpop.permute.xlu0 %1513
        %1515 = vrot.lane.b32.xlu0 %v637, 28
        %v1516 = vpop.permute.xlu0 %1515
        %1517 = vrot.lane.b32.xlu0 %v638, 28
        %v1518 = vpop.permute.xlu0 %1517
        %1519 = vrot.lane.b32.xlu0 %v639, 28
        %v1520 = vpop.permute.xlu0 %1519
        %1521 = vrot.lane.b32.xlu0 %v640, 28
        %v1522 = vpop.permute.xlu0 %1521
        %1523 = vrot.lane.b32.xlu0 %v641, 28
        %v1524 = vpop.permute.xlu0 %1523
        %1525 = vrot.lane.b32.xlu0 %v642, 28
        %v1526 = vpop.permute.xlu0 %1525
        %1527 = vrot.lane.b32.xlu0 %v643, 28
        %v1528 = vpop.permute.xlu0 %1527
        %1529 = vrot.lane.b32.xlu0 %v644, 28
        %v1530 = vpop.permute.xlu0 %1529
        %1531 = vrot.lane.b32.xlu0 %v645, 28
        %v1532 = vpop.permute.xlu0 %1531
        %1533 = vrot.lane.b32.xlu0 %v646, 28
        %v1534 = vpop.permute.xlu0 %1533
        %1535 = vrot.lane.b32.xlu0 %v647, 28
        %v1536 = vpop.permute.xlu0 %1535
        %1537 = vrot.lane.b32.xlu0 %v648, 28
        %v1538 = vpop.permute.xlu0 %1537
        %1539 = vrot.lane.b32.xlu0 %v649, 28
        %v1540 = vpop.permute.xlu0 %1539
        %1541 = vrot.lane.b32.xlu0 %v650, 28
        %v1542 = vpop.permute.xlu0 %1541
        %1543 = vrot.lane.b32.xlu0 %v651, 28
        %v1544 = vpop.permute.xlu0 %1543
        %1545 = vrot.lane.b32.xlu0 %v652, 28
        %v1546 = vpop.permute.xlu0 %1545
        %1547 = vrot.lane.b32.xlu0 %v653, 28
        %v1548 = vpop.permute.xlu0 %1547
        %1549 = vrot.lane.b32.xlu0 %v654, 28
        %v1550 = vpop.permute.xlu0 %1549
        %1615 = vrot.lane.b32.xlu0 %v655, 32
        %v1616 = vpop.permute.xlu0 %1615
        %1617 = vrot.lane.b32.xlu0 %v656, 32
        %v1618 = vpop.permute.xlu0 %1617
        %1619 = vrot.lane.b32.xlu0 %v657, 32
        %v1620 = vpop.permute.xlu0 %1619
        %1621 = vrot.lane.b32.xlu0 %v658, 32
        %v1622 = vpop.permute.xlu0 %1621
        %1623 = vrot.lane.b32.xlu0 %v659, 32
        %v1624 = vpop.permute.xlu0 %1623
        %1625 = vrot.lane.b32.xlu0 %v660, 32
        %v1626 = vpop.permute.xlu0 %1625
        %1627 = vrot.lane.b32.xlu0 %v661, 32
        %v1628 = vpop.permute.xlu0 %1627
        %1629 = vrot.lane.b32.xlu0 %v662, 32
        %v1630 = vpop.permute.xlu0 %1629
        %1631 = vrot.lane.b32.xlu0 %v663, 32
        %v1632 = vpop.permute.xlu0 %1631
        %1633 = vrot.lane.b32.xlu0 %v664, 32
        %v1634 = vpop.permute.xlu0 %1633
        %1635 = vrot.lane.b32.xlu0 %v665, 32
        %v1636 = vpop.permute.xlu0 %1635
        %1637 = vrot.lane.b32.xlu0 %v666, 32
        %v1638 = vpop.permute.xlu0 %1637
        %1639 = vrot.lane.b32.xlu0 %v667, 32
        %v1640 = vpop.permute.xlu0 %1639
        %1641 = vrot.lane.b32.xlu0 %v668, 32
        %v1642 = vpop.permute.xlu0 %1641
        %1643 = vrot.lane.b32.xlu0 %v669, 32
        %v1644 = vpop.permute.xlu0 %1643
        %1645 = vrot.lane.b32.xlu0 %v670, 32
        %v1646 = vpop.permute.xlu0 %1645
        %1647 = vrot.lane.b32.xlu0 %v671, 32
        %v1648 = vpop.permute.xlu0 %1647
        %1649 = vrot.lane.b32.xlu0 %v672, 32
        %v1650 = vpop.permute.xlu0 %1649
        %1651 = vrot.lane.b32.xlu0 %v673, 32
        %v1652 = vpop.permute.xlu0 %1651
        %1653 = vrot.lane.b32.xlu0 %v674, 32
        %v1654 = vpop.permute.xlu0 %1653
        %1655 = vrot.lane.b32.xlu0 %v675, 32
        %v1656 = vpop.permute.xlu0 %1655
        %1657 = vrot.lane.b32.xlu0 %v676, 32
        %v1658 = vpop.permute.xlu0 %1657
        %1659 = vrot.lane.b32.xlu0 %v677, 32
        %v1660 = vpop.permute.xlu0 %1659
        %1661 = vrot.lane.b32.xlu0 %v678, 32
        %v1662 = vpop.permute.xlu0 %1661
        %1663 = vrot.lane.b32.xlu0 %v679, 32
        %v1664 = vpop.permute.xlu0 %1663
        %1665 = vrot.lane.b32.xlu0 %v680, 32
        %v1666 = vpop.permute.xlu0 %1665
        %1667 = vrot.lane.b32.xlu0 %v681, 32
        %v1668 = vpop.permute.xlu0 %1667
        %1669 = vrot.lane.b32.xlu0 %v682, 32
        %v1670 = vpop.permute.xlu0 %1669
        %1671 = vrot.lane.b32.xlu0 %v683, 32
        %v1672 = vpop.permute.xlu0 %1671
        %1673 = vrot.lane.b32.xlu0 %v684, 32
        %v1674 = vpop.permute.xlu0 %1673
        %1675 = vrot.lane.b32.xlu0 %v685, 32
        %v1676 = vpop.permute.xlu0 %1675
        %1677 = vrot.lane.b32.xlu0 %v686, 32
        %v1678 = vpop.permute.xlu0 %1677
        %v1711 = vsel %vm277, %v398, %v720
        %v1712 = vsel %vm277, %v399, %v722
        %v1713 = vsel %vm277, %v400, %v724
        %v1714 = vsel %vm277, %v401, %v726
        %v1715 = vsel %vm277, %v402, %v728
        %v1716 = vsel %vm277, %v403, %v730
        %v1717 = vsel %vm277, %v404, %v732
        %v1718 = vsel %vm277, %v405, %v734
        %v1719 = vsel %vm277, %v406, %v736
        %v1720 = vsel %vm277, %v407, %v738
        %v1721 = vsel %vm277, %v408, %v740
        %v1722 = vsel %vm277, %v409, %v742
        %v1723 = vsel %vm277, %v410, %v744
        %v1724 = vsel %vm277, %v411, %v746
        %v1725 = vsel %vm277, %v412, %v748
        %v1726 = vsel %vm277, %v413, %v750
        %v1727 = vsel %vm277, %v414, %v752
        %v1728 = vsel %vm277, %v415, %v754
        %v1729 = vsel %vm277, %v416, %v756
        %v1730 = vsel %vm277, %v417, %v758
        %v1731 = vsel %vm277, %v418, %v760
        %v1732 = vsel %vm277, %v419, %v762
        %v1733 = vsel %vm277, %v420, %v764
        %v1734 = vsel %vm277, %v421, %v766
        %v1735 = vsel %vm277, %v422, %v768
        %v1736 = vsel %vm277, %v423, %v770
        %v1737 = vsel %vm277, %v424, %v772
        %v1738 = vsel %vm277, %v425, %v774
        %v1739 = vsel %vm277, %v426, %v776
        %v1740 = vsel %vm277, %v427, %v778
        %v1741 = vsel %vm277, %v428, %v780
        %v1742 = vsel %vm277, %v429, %v782
        %vm1743 = vcmask 64512
        %v1744 = vsel %vm1743, %v1711, %v848
        %v1745 = vsel %vm1743, %v1712, %v850
        %v1746 = vsel %vm1743, %v1713, %v852
        %v1747 = vsel %vm1743, %v1714, %v854
        %v1748 = vsel %vm1743, %v1715, %v856
        %v1749 = vsel %vm1743, %v1716, %v858
        %v1750 = vsel %vm1743, %v1717, %v860
        %v1751 = vsel %vm1743, %v1718, %v862
        %v1752 = vsel %vm1743, %v1719, %v864
        %v1753 = vsel %vm1743, %v1720, %v866
        %v1754 = vsel %vm1743, %v1721, %v868
        %v1755 = vsel %vm1743, %v1722, %v870
        %v1756 = vsel %vm1743, %v1723, %v872
        %v1757 = vsel %vm1743, %v1724, %v874
        %v1758 = vsel %vm1743, %v1725, %v876
        %v1759 = vsel %vm1743, %v1726, %v878
        %v1760 = vsel %vm1743, %v1727, %v880
        %v1761 = vsel %vm1743, %v1728, %v882
        %v1762 = vsel %vm1743, %v1729, %v884
        %v1763 = vsel %vm1743, %v1730, %v886
        %v1764 = vsel %vm1743, %v1731, %v888
        %v1765 = vsel %vm1743, %v1732, %v890
        %v1766 = vsel %vm1743, %v1733, %v892
        %v1767 = vsel %vm1743, %v1734, %v894
        %v1768 = vsel %vm1743, %v1735, %v896
        %v1769 = vsel %vm1743, %v1736, %v898
        %v1770 = vsel %vm1743, %v1737, %v900
        %v1771 = vsel %vm1743, %v1738, %v902
        %v1772 = vsel %vm1743, %v1739, %v904
        %v1773 = vsel %vm1743, %v1740, %v906
        %v1774 = vsel %vm1743, %v1741, %v908
        %v1775 = vsel %vm1743, %v1742, %v910
        %vm1776 = vcmask 97280
        %v1777 = vsel %vm1776, %v1744, %v976
        %v1778 = vsel %vm1776, %v1745, %v978
        %v1779 = vsel %vm1776, %v1746, %v980
        %v1780 = vsel %vm1776, %v1747, %v982
        %v1781 = vsel %vm1776, %v1748, %v984
        %v1782 = vsel %vm1776, %v1749, %v986
        %v1783 = vsel %vm1776, %v1750, %v988
        %v1784 = vsel %vm1776, %v1751, %v990
        %v1785 = vsel %vm1776, %v1752, %v992
        %v1786 = vsel %vm1776, %v1753, %v994
        %v1787 = vsel %vm1776, %v1754, %v996
        %v1788 = vsel %vm1776, %v1755, %v998
        %v1789 = vsel %vm1776, %v1756, %v1000
        %v1790 = vsel %vm1776, %v1757, %v1002
        %v1791 = vsel %vm1776, %v1758, %v1004
        %v1792 = vsel %vm1776, %v1759, %v1006
        %v1793 = vsel %vm1776, %v1760, %v1008
        %v1794 = vsel %vm1776, %v1761, %v1010
        %v1795 = vsel %vm1776, %v1762, %v1012
        %v1796 = vsel %vm1776, %v1763, %v1014
        %v1797 = vsel %vm1776, %v1764, %v1016
        %v1798 = vsel %vm1776, %v1765, %v1018
        %v1799 = vsel %vm1776, %v1766, %v1020
        %v1800 = vsel %vm1776, %v1767, %v1022
        %v1801 = vsel %vm1776, %v1768, %v1024
        %v1802 = vsel %vm1776, %v1769, %v1026
        %v1803 = vsel %vm1776, %v1770, %v1028
        %v1804 = vsel %vm1776, %v1771, %v1030
        %v1805 = vsel %vm1776, %v1772, %v1032
        %v1806 = vsel %vm1776, %v1773, %v1034
        %v1807 = vsel %vm1776, %v1774, %v1036
        %v1808 = vsel %vm1776, %v1775, %v1038
        %vm1809 = vcmask 130048
        %v1810 = vsel %vm1809, %v1777, %v1104
        %v1811 = vsel %vm1809, %v1778, %v1106
        %v1812 = vsel %vm1809, %v1779, %v1108
        %v1813 = vsel %vm1809, %v1780, %v1110
        %v1814 = vsel %vm1809, %v1781, %v1112
        %v1815 = vsel %vm1809, %v1782, %v1114
        %v1816 = vsel %vm1809, %v1783, %v1116
        %v1817 = vsel %vm1809, %v1784, %v1118
        %v1818 = vsel %vm1809, %v1785, %v1120
        %v1819 = vsel %vm1809, %v1786, %v1122
        %v1820 = vsel %vm1809, %v1787, %v1124
        %v1821 = vsel %vm1809, %v1788, %v1126
        %v1822 = vsel %vm1809, %v1789, %v1128
        %v1823 = vsel %vm1809, %v1790, %v1130
        %v1824 = vsel %vm1809, %v1791, %v1132
        %v1825 = vsel %vm1809, %v1792, %v1134
        %v1826 = vsel %vm1809, %v1793, %v1136
        %v1827 = vsel %vm1809, %v1794, %v1138
        %v1828 = vsel %vm1809, %v1795, %v1140
        %v1829 = vsel %vm1809, %v1796, %v1142
        %v1830 = vsel %vm1809, %v1797, %v1144
        %v1831 = vsel %vm1809, %v1798, %v1146
        %v1832 = vsel %vm1809, %v1799, %v1148
        %v1833 = vsel %vm1809, %v1800, %v1150
        %v1834 = vsel %vm1809, %v1801, %v1152
        %v1835 = vsel %vm1809, %v1802, %v1154
        %v1836 = vsel %vm1809, %v1803, %v1156
        %v1837 = vsel %vm1809, %v1804, %v1158
        %v1838 = vsel %vm1809, %v1805, %v1160
        %v1839 = vsel %vm1809, %v1806, %v1162
        %v1840 = vsel %vm1809, %v1807, %v1164
        %v1841 = vsel %vm1809, %v1808, %v1166
        %vm1842 = vcmask 162816
        %v1843 = vsel %vm1842, %v1810, %v1232
        %v1844 = vsel %vm1842, %v1811, %v1234
        %v1845 = vsel %vm1842, %v1812, %v1236
        %v1846 = vsel %vm1842, %v1813, %v1238
        %v1847 = vsel %vm1842, %v1814, %v1240
        %v1848 = vsel %vm1842, %v1815, %v1242
        %v1849 = vsel %vm1842, %v1816, %v1244
        %v1850 = vsel %vm1842, %v1817, %v1246
        %v1851 = vsel %vm1842, %v1818, %v1248
        %v1852 = vsel %vm1842, %v1819, %v1250
        %v1853 = vsel %vm1842, %v1820, %v1252
        %v1854 = vsel %vm1842, %v1821, %v1254
        %v1855 = vsel %vm1842, %v1822, %v1256
        %v1856 = vsel %vm1842, %v1823, %v1258
        %v1857 = vsel %vm1842, %v1824, %v1260
        %v1858 = vsel %vm1842, %v1825, %v1262
        %v1859 = vsel %vm1842, %v1826, %v1264
        %v1860 = vsel %vm1842, %v1827, %v1266
        %v1861 = vsel %vm1842, %v1828, %v1268
        %v1862 = vsel %vm1842, %v1829, %v1270
        %v1863 = vsel %vm1842, %v1830, %v1272
        %v1864 = vsel %vm1842, %v1831, %v1274
        %v1865 = vsel %vm1842, %v1832, %v1276
        %v1866 = vsel %vm1842, %v1833, %v1278
        %v1867 = vsel %vm1842, %v1834, %v1280
        %v1868 = vsel %vm1842, %v1835, %v1282
        %v1869 = vsel %vm1842, %v1836, %v1284
        %v1870 = vsel %vm1842, %v1837, %v1286
        %v1871 = vsel %vm1842, %v1838, %v1288
        %v1872 = vsel %vm1842, %v1839, %v1290
        %v1873 = vsel %vm1842, %v1840, %v1292
        %v1874 = vsel %vm1842, %v1841, %v1294
        %vm1875 = vcmask 195584
        %v1876 = vsel %vm1875, %v1843, %v1360
        %v1877 = vsel %vm1875, %v1844, %v1362
        %v1878 = vsel %vm1875, %v1845, %v1364
        %v1879 = vsel %vm1875, %v1846, %v1366
        %v1880 = vsel %vm1875, %v1847, %v1368
        %v1881 = vsel %vm1875, %v1848, %v1370
        %v1882 = vsel %vm1875, %v1849, %v1372
        %v1883 = vsel %vm1875, %v1850, %v1374
        %v1884 = vsel %vm1875, %v1851, %v1376
        %v1885 = vsel %vm1875, %v1852, %v1378
        %v1886 = vsel %vm1875, %v1853, %v1380
        %v1887 = vsel %vm1875, %v1854, %v1382
        %v1888 = vsel %vm1875, %v1855, %v1384
        %v1889 = vsel %vm1875, %v1856, %v1386
        %v1890 = vsel %vm1875, %v1857, %v1388
        %v1891 = vsel %vm1875, %v1858, %v1390
        %v1892 = vsel %vm1875, %v1859, %v1392
        %v1893 = vsel %vm1875, %v1860, %v1394
        %v1894 = vsel %vm1875, %v1861, %v1396
        %v1895 = vsel %vm1875, %v1862, %v1398
        %v1896 = vsel %vm1875, %v1863, %v1400
        %v1897 = vsel %vm1875, %v1864, %v1402
        %v1898 = vsel %vm1875, %v1865, %v1404
        %v1899 = vsel %vm1875, %v1866, %v1406
        %v1900 = vsel %vm1875, %v1867, %v1408
        %v1901 = vsel %vm1875, %v1868, %v1410
        %v1902 = vsel %vm1875, %v1869, %v1412
        %v1903 = vsel %vm1875, %v1870, %v1414
        %v1904 = vsel %vm1875, %v1871, %v1416
        %v1905 = vsel %vm1875, %v1872, %v1418
        %v1906 = vsel %vm1875, %v1873, %v1420
        %v1907 = vsel %vm1875, %v1874, %v1422
        %vm1908 = vcmask 228352
        %v1909 = vsel %vm1908, %v1876, %v1488
        %v1910 = vsel %vm1908, %v1877, %v1490
        %v1911 = vsel %vm1908, %v1878, %v1492
        %v1912 = vsel %vm1908, %v1879, %v1494
        %v1913 = vsel %vm1908, %v1880, %v1496
        %v1914 = vsel %vm1908, %v1881, %v1498
        %v1915 = vsel %vm1908, %v1882, %v1500
        %v1916 = vsel %vm1908, %v1883, %v1502
        %v1917 = vsel %vm1908, %v1884, %v1504
        %v1918 = vsel %vm1908, %v1885, %v1506
        %v1919 = vsel %vm1908, %v1886, %v1508
        %v1920 = vsel %vm1908, %v1887, %v1510
        %v1921 = vsel %vm1908, %v1888, %v1512
        %v1922 = vsel %vm1908, %v1889, %v1514
        %v1923 = vsel %vm1908, %v1890, %v1516
        %v1924 = vsel %vm1908, %v1891, %v1518
        %v1925 = vsel %vm1908, %v1892, %v1520
        %v1926 = vsel %vm1908, %v1893, %v1522
        %v1927 = vsel %vm1908, %v1894, %v1524
        %v1928 = vsel %vm1908, %v1895, %v1526
        %v1929 = vsel %vm1908, %v1896, %v1528
        %v1930 = vsel %vm1908, %v1897, %v1530
        %v1931 = vsel %vm1908, %v1898, %v1532
        %v1932 = vsel %vm1908, %v1899, %v1534
        %v1933 = vsel %vm1908, %v1900, %v1536
        %v1934 = vsel %vm1908, %v1901, %v1538
        %v1935 = vsel %vm1908, %v1902, %v1540
        %v1936 = vsel %vm1908, %v1903, %v1542
        %v1937 = vsel %vm1908, %v1904, %v1544
        %v1938 = vsel %vm1908, %v1905, %v1546
        %v1939 = vsel %vm1908, %v1906, %v1548
        %v1940 = vsel %vm1908, %v1907, %v1550
        %vm1941 = vcmask 261120
        %v1942 = vsel %vm1941, %v1909, %v1616
        %v1943 = vsel %vm1941, %v1910, %v1618
        %v1944 = vsel %vm1941, %v1911, %v1620
        %v1945 = vsel %vm1941, %v1912, %v1622
        %v1946 = vsel %vm1941, %v1913, %v1624
        %v1947 = vsel %vm1941, %v1914, %v1626
        %v1948 = vsel %vm1941, %v1915, %v1628
        %v1949 = vsel %vm1941, %v1916, %v1630
        %v1950 = vsel %vm1941, %v1917, %v1632
        %v1951 = vsel %vm1941, %v1918, %v1634
        %v1952 = vsel %vm1941, %v1919, %v1636
        %v1953 = vsel %vm1941, %v1920, %v1638
        %v1954 = vsel %vm1941, %v1921, %v1640
        %v1955 = vsel %vm1941, %v1922, %v1642
        %v1956 = vsel %vm1941, %v1923, %v1644
        %v1957 = vsel %vm1941, %v1924, %v1646
        %v1958 = vsel %vm1941, %v1925, %v1648
        %v1959 = vsel %vm1941, %v1926, %v1650
        %v1960 = vsel %vm1941, %v1927, %v1652
        %v1961 = vsel %vm1941, %v1928, %v1654
        %v1962 = vsel %vm1941, %v1929, %v1656
        %v1963 = vsel %vm1941, %v1930, %v1658
        %v1964 = vsel %vm1941, %v1931, %v1660
        %v1965 = vsel %vm1941, %v1932, %v1662
        %v1966 = vsel %vm1941, %v1933, %v1664
        %v1967 = vsel %vm1941, %v1934, %v1666
        %v1968 = vsel %vm1941, %v1935, %v1668
        %v1969 = vsel %vm1941, %v1936, %v1670
        %v1970 = vsel %vm1941, %v1937, %v1672
        %v1971 = vsel %vm1941, %v1938, %v1674
        %v1972 = vsel %vm1941, %v1939, %v1676
        %v1973 = vsel %vm1941, %v1940, %v1678
        %v1974 = vld [vmem:[%s1] sm:$0xff]
        %v1975 = vld [vmem:[%s1 + $0x8] sm:$0xff]
        %v1976 = vld [vmem:[%s1 + $0x10] sm:$0xff]
        %v1977 = vld [vmem:[%s1 + $0x18] sm:$0xff]
        %v1978 = vld [vmem:[%s1 + $0x20] sm:$0xf]
        %vm1979 = vcmask 293888
        %v1981 = vsel %vm1979, %v1942, 0
        %v1984 = vsel %vm1979, %v1943, 0
        %v1987 = vsel %vm1979, %v1944, 0
        %v1990 = vsel %vm1979, %v1945, 0
        %v1993 = vsel %vm1979, %v1946, 0
        %v1996 = vsel %vm1979, %v1947, 0
        %v1999 = vsel %vm1979, %v1948, 0
        %v2002 = vsel %vm1979, %v1949, 0
        %v2005 = vsel %vm1979, %v1950, 0
        %v2008 = vsel %vm1979, %v1951, 0
        %v2011 = vsel %vm1979, %v1952, 0
        %v2014 = vsel %vm1979, %v1953, 0
        %v2017 = vsel %vm1979, %v1954, 0
        %v2020 = vsel %vm1979, %v1955, 0
        %v2023 = vsel %vm1979, %v1956, 0
        %v2026 = vsel %vm1979, %v1957, 0
        %v2029 = vsel %vm1979, %v1958, 0
        %v2032 = vsel %vm1979, %v1959, 0
        %v2035 = vsel %vm1979, %v1960, 0
        %v2038 = vsel %vm1979, %v1961, 0
        %v2041 = vsel %vm1979, %v1962, 0
        %v2044 = vsel %vm1979, %v1963, 0
        %v2047 = vsel %vm1979, %v1964, 0
        %v2050 = vsel %vm1979, %v1965, 0
        %v2053 = vsel %vm1979, %v1966, 0
        %v2056 = vsel %vm1979, %v1967, 0
        %v2059 = vsel %vm1979, %v1968, 0
        %v2062 = vsel %vm1979, %v1969, 0
        %v2065 = vsel %vm1979, %v1970, 0
        %v2068 = vsel %vm1979, %v1971, 0
        %v2071 = vsel %vm1979, %v1972, 0
        %v2074 = vsel %vm1979, %v1973, 0
        %vm2076 = vcmask 1043456
        %v2078 = vsel %vm2076, %v1978, 0
        %2080 = vmatprep.subr.mxu0 0.0
        %2081 = vmatpush1.msra.mxu0 0.0
        %2082 = vmatprep.subr.mxu0 0.0
        %2083 = vmatpush1.msra.mxu0 0.0
        %2084 = vmatprep.subr.mxu0 0.0
        %2085 = vmatpush1.msra.mxu0 0.0
        %2086 = vmatprep.subr.mxu0 0.0
        %2087 = vmatpush1.msra.mxu0 0.0
        %2088 = vmatprep.subr.mxu0 0.0
        %2089 = vmatpush1.msra.mxu0 0.0
        %2090 = vmatprep.subr.mxu0 0.0
        %2091 = vmatpush1.msra.mxu0 0.0
        %2092 = vmatprep.subr.mxu0 0.0
        %2093 = vmatpush1.msra.mxu0 0.0
        %2094 = vmatprep.subr.mxu0 0.0
        %2095 = vmatpush1.msra.mxu0 0.0
        %2096 = vmatprep.subr.mxu0 0.0
        %2097 = vmatpush1.msra.mxu0 0.0
        %2098 = vmatprep.subr.mxu0 0.0
        %2099 = vmatpush1.msra.mxu0 0.0
        %2100 = vmatprep.subr.mxu0 0.0
        %2101 = vmatpush1.msra.mxu0 0.0
        %2102 = vmatprep.subr.mxu0 0.0
        %2103 = vmatpush1.msra.mxu0 %v2078
        %2104 = vmatprep.subr.mxu0 0.0
        %2105 = vmatpush1.msra.mxu0 %v1977
        %2106 = vmatprep.subr.mxu0 0.0
        %2107 = vmatpush1.msra.mxu0 %v1976
        %2108 = vmatprep.subr.mxu0 0.0
        %2109 = vmatpush1.msra.mxu0 %v1975
        %2110 = vmatprep.subr.mxu0 0.0
        %2111 = vmatpush1.msra.mxu0 %v1974
        %2112 = vmatprep.subr.mxu0 0.0
        %2113 = vmatpush2.msra.mxu0 0.0
        %2114 = vmatprep.subr.mxu0 0.0
        %2115 = vmatpush2.msra.mxu0 0.0
        %2116 = vmatprep.subr.mxu0 0.0
        %2117 = vmatpush2.msra.mxu0 0.0
        %2118 = vmatprep.subr.mxu0 0.0
        %2119 = vmatpush2.msra.mxu0 0.0
        %2120 = vmatprep.subr.mxu0 0.0
        %2121 = vmatpush2.msra.mxu0 0.0
        %2122 = vmatprep.subr.mxu0 0.0
        %2123 = vmatpush2.msra.mxu0 0.0
        %2124 = vmatprep.subr.mxu0 0.0
        %2125 = vmatpush2.msra.mxu0 0.0
        %2126 = vmatprep.subr.mxu0 0.0
        %2127 = vmatpush2.msra.mxu0 0.0
        %2128 = vmatprep.subr.mxu0 0.0
        %2129 = vmatpush2.msra.mxu0 0.0
        %2130 = vmatprep.subr.mxu0 0.0
        %2131 = vmatpush2.msra.mxu0 0.0
        %2132 = vmatprep.subr.mxu0 0.0
        %2133 = vmatpush2.msra.mxu0 0.0
        %2134 = vmatprep.subr.mxu0 0.0
        %2135 = vmatpush2.msra.mxu0 0.0
        %2136 = vmatprep.subr.mxu0 0.0
        %2137 = vmatpush2.msra.mxu0 0.0
        %2138 = vmatprep.subr.mxu0 0.0
        %2139 = vmatpush2.msra.mxu0 0.0
        %2140 = vmatprep.subr.mxu0 0.0
        %2141 = vmatpush2.msra.mxu0 0.0
        %2142 = vmatprep.subr.mxu0 0.0
        %2143 = vmatpush2.msra.mxu0 0.0
        %2144 = vmatprep.mubr.f32.mxu0 0.0
        %2145 = vmatmul.mubr.f32.gmra.mxu0 %v1981
        %v2146 = vpop.f32.mrf.mxu0
        %v2147 = vadd.f32 0.0, %v2146
        %v2148 = vpop.f32.mrf.mxu0
        %2149 = vmatprep.mubr.f32.mxu0 0.0
        %2150 = vmatmul.mubr.f32.gmra.mxu0 %v1984
        %v2151 = vpop.f32.mrf.mxu0
        %v2152 = vadd.f32 0.0, %v2151
        %v2153 = vpop.f32.mrf.mxu0
        %2154 = vmatprep.mubr.f32.mxu0 0.0
        %2155 = vmatmul.mubr.f32.gmra.mxu0 %v1987
        %v2156 = vpop.f32.mrf.mxu0
        %v2157 = vadd.f32 0.0, %v2156
        %v2158 = vpop.f32.mrf.mxu0
        %2159 = vmatprep.mubr.f32.mxu0 0.0
        %2160 = vmatmul.mubr.f32.gmra.mxu0 %v1990
        %v2161 = vpop.f32.mrf.mxu0
        %v2162 = vadd.f32 0.0, %v2161
        %v2163 = vpop.f32.mrf.mxu0
        %2164 = vmatprep.mubr.f32.mxu0 0.0
        %2165 = vmatmul.mubr.f32.gmra.mxu0 %v1993
        %v2166 = vpop.f32.mrf.mxu0
        %v2167 = vadd.f32 0.0, %v2166
        %v2168 = vpop.f32.mrf.mxu0
        %2169 = vmatprep.mubr.f32.mxu0 0.0
        %2170 = vmatmul.mubr.f32.gmra.mxu0 %v1996
        %v2171 = vpop.f32.mrf.mxu0
        %v2172 = vadd.f32 0.0, %v2171
        %v2173 = vpop.f32.mrf.mxu0
        %2174 = vmatprep.mubr.f32.mxu0 0.0
        %2175 = vmatmul.mubr.f32.gmra.mxu0 %v1999
        %v2176 = vpop.f32.mrf.mxu0
        %v2177 = vadd.f32 0.0, %v2176
        %v2178 = vpop.f32.mrf.mxu0
        %2179 = vmatprep.mubr.f32.mxu0 0.0
        %2180 = vmatmul.mubr.f32.gmra.mxu0 %v2002
        %v2181 = vpop.f32.mrf.mxu0
        %v2182 = vadd.f32 0.0, %v2181
        %v2183 = vpop.f32.mrf.mxu0
        %2184 = vmatprep.mubr.f32.mxu0 0.0
        %2185 = vmatmul.mubr.f32.gmra.mxu0 %v2005
        %v2186 = vpop.f32.mrf.mxu0
        %v2187 = vadd.f32 0.0, %v2186
        %v2188 = vpop.f32.mrf.mxu0
        %2189 = vmatprep.mubr.f32.mxu0 0.0
        %2190 = vmatmul.mubr.f32.gmra.mxu0 %v2008
        %v2191 = vpop.f32.mrf.mxu0
        %v2192 = vadd.f32 0.0, %v2191
        %v2193 = vpop.f32.mrf.mxu0
        %2194 = vmatprep.mubr.f32.mxu0 0.0
        %2195 = vmatmul.mubr.f32.gmra.mxu0 %v2011
        %v2196 = vpop.f32.mrf.mxu0
        %v2197 = vadd.f32 0.0, %v2196
        %v2198 = vpop.f32.mrf.mxu0
        %2199 = vmatprep.mubr.f32.mxu0 0.0
        %2200 = vmatmul.mubr.f32.gmra.mxu0 %v2014
        %v2201 = vpop.f32.mrf.mxu0
        %v2202 = vadd.f32 0.0, %v2201
        %v2203 = vpop.f32.mrf.mxu0
        %2204 = vmatprep.mubr.f32.mxu0 0.0
        %2205 = vmatmul.mubr.f32.gmra.mxu0 %v2017
        %v2206 = vpop.f32.mrf.mxu0
        %v2207 = vadd.f32 0.0, %v2206
        %v2208 = vpop.f32.mrf.mxu0
        %2209 = vmatprep.mubr.f32.mxu0 0.0
        %2210 = vmatmul.mubr.f32.gmra.mxu0 %v2020
        %v2211 = vpop.f32.mrf.mxu0
        %v2212 = vadd.f32 0.0, %v2211
        %v2213 = vpop.f32.mrf.mxu0
        %2214 = vmatprep.mubr.f32.mxu0 0.0
        %2215 = vmatmul.mubr.f32.gmra.mxu0 %v2023
        %v2216 = vpop.f32.mrf.mxu0
        %v2217 = vadd.f32 0.0, %v2216
        %v2218 = vpop.f32.mrf.mxu0
        %2219 = vmatprep.mubr.f32.mxu0 0.0
        %2220 = vmatmul.mubr.f32.gmra.mxu0 %v2026
        %v2221 = vpop.f32.mrf.mxu0
        %v2222 = vadd.f32 0.0, %v2221
        %v2223 = vpop.f32.mrf.mxu0
        %2224 = vmatprep.mubr.f32.mxu0 0.0
        %2225 = vmatmul.mubr.f32.gmra.mxu0 %v2029
        %v2226 = vpop.f32.mrf.mxu0
        %v2227 = vadd.f32 0.0, %v2226
        %v2228 = vpop.f32.mrf.mxu0
        %2229 = vmatprep.mubr.f32.mxu0 0.0
        %2230 = vmatmul.mubr.f32.gmra.mxu0 %v2032
        %v2231 = vpop.f32.mrf.mxu0
        %v2232 = vadd.f32 0.0, %v2231
        %v2233 = vpop.f32.mrf.mxu0
        %2234 = vmatprep.mubr.f32.mxu0 0.0
        %2235 = vmatmul.mubr.f32.gmra.mxu0 %v2035
        %v2236 = vpop.f32.mrf.mxu0
        %v2237 = vadd.f32 0.0, %v2236
        %v2238 = vpop.f32.mrf.mxu0
        %2239 = vmatprep.mubr.f32.mxu0 0.0
        %2240 = vmatmul.mubr.f32.gmra.mxu0 %v2038
        %v2241 = vpop.f32.mrf.mxu0
        %v2242 = vadd.f32 0.0, %v2241
        %v2243 = vpop.f32.mrf.mxu0
        %2244 = vmatprep.mubr.f32.mxu0 0.0
        %2245 = vmatmul.mubr.f32.gmra.mxu0 %v2041
        %v2246 = vpop.f32.mrf.mxu0
        %v2247 = vadd.f32 0.0, %v2246
        %v2248 = vpop.f32.mrf.mxu0
        %2249 = vmatprep.mubr.f32.mxu0 0.0
        %2250 = vmatmul.mubr.f32.gmra.mxu0 %v2044
        %v2251 = vpop.f32.mrf.mxu0
        %v2252 = vadd.f32 0.0, %v2251
        %v2253 = vpop.f32.mrf.mxu0
        %2254 = vmatprep.mubr.f32.mxu0 0.0
        %2255 = vmatmul.mubr.f32.gmra.mxu0 %v2047
        %v2256 = vpop.f32.mrf.mxu0
        %v2257 = vadd.f32 0.0, %v2256
        %v2258 = vpop.f32.mrf.mxu0
        %2259 = vmatprep.mubr.f32.mxu0 0.0
        %2260 = vmatmul.mubr.f32.gmra.mxu0 %v2050
        %v2261 = vpop.f32.mrf.mxu0
        %v2262 = vadd.f32 0.0, %v2261
        %v2263 = vpop.f32.mrf.mxu0
        %2264 = vmatprep.mubr.f32.mxu0 0.0
        %2265 = vmatmul.mubr.f32.gmra.mxu0 %v2053
        %v2266 = vpop.f32.mrf.mxu0
        %v2267 = vadd.f32 0.0, %v2266
        %v2268 = vpop.f32.mrf.mxu0
        %2269 = vmatprep.mubr.f32.mxu0 0.0
        %2270 = vmatmul.mubr.f32.gmra.mxu0 %v2056
        %v2271 = vpop.f32.mrf.mxu0
        %v2272 = vadd.f32 0.0, %v2271
        %v2273 = vpop.f32.mrf.mxu0
        %2274 = vmatprep.mubr.f32.mxu0 0.0
        %2275 = vmatmul.mubr.f32.gmra.mxu0 %v2059
        %v2276 = vpop.f32.mrf.mxu0
        %v2277 = vadd.f32 0.0, %v2276
        %v2278 = vpop.f32.mrf.mxu0
        %2279 = vmatprep.mubr.f32.mxu0 0.0
        %2280 = vmatmul.mubr.f32.gmra.mxu0 %v2062
        %v2281 = vpop.f32.mrf.mxu0
        %v2282 = vadd.f32 0.0, %v2281
        %v2283 = vpop.f32.mrf.mxu0
        %2284 = vmatprep.mubr.f32.mxu0 0.0
        %2285 = vmatmul.mubr.f32.gmra.mxu0 %v2065
        %v2286 = vpop.f32.mrf.mxu0
        %v2287 = vadd.f32 0.0, %v2286
        %v2288 = vpop.f32.mrf.mxu0
        %2289 = vmatprep.mubr.f32.mxu0 0.0
        %2290 = vmatmul.mubr.f32.gmra.mxu0 %v2068
        %v2291 = vpop.f32.mrf.mxu0
        %v2292 = vadd.f32 0.0, %v2291
        %v2293 = vpop.f32.mrf.mxu0
        %2294 = vmatprep.mubr.f32.mxu0 0.0
        %2295 = vmatmul.mubr.f32.gmra.mxu0 %v2071
        %v2296 = vpop.f32.mrf.mxu0
        %v2297 = vadd.f32 0.0, %v2296
        %v2298 = vpop.f32.mrf.mxu0
        %2299 = vmatprep.mubr.f32.mxu0 0.0
        %2300 = vmatmul.mubr.f32.gmra.mxu0 %v2074
        %v2301 = vpop.f32.mrf.mxu0
        %v2302 = vadd.f32 0.0, %v2301
        %v2303 = vpop.f32.mrf.mxu0
        %2304 = vdwg.mxu0
        %v2305 = vld [vmem:[%s2] sm:$0x1]
        %v2307 = vlaneseq
        %v2308 = vshrl.u32 %v2307, 7
        %v2309 = vsub.s32 0, %v2308
        %v2310 = vrot.slane %v2305, %v2309
        %v2312 = vmul.f32 %v2147, %v2310
        %v2313 = vmul.f32 %v2152, %v2310
        %v2314 = vmul.f32 %v2157, %v2310
        %v2315 = vmul.f32 %v2162, %v2310
        %v2316 = vmul.f32 %v2167, %v2310
        %v2317 = vmul.f32 %v2172, %v2310
        %v2318 = vmul.f32 %v2177, %v2310
        %v2319 = vmul.f32 %v2182, %v2310
        %v2320 = vmul.f32 %v2187, %v2310
        %v2321 = vmul.f32 %v2192, %v2310
        %v2322 = vmul.f32 %v2197, %v2310
        %v2323 = vmul.f32 %v2202, %v2310
        %v2324 = vmul.f32 %v2207, %v2310
        %v2325 = vmul.f32 %v2212, %v2310
        %v2326 = vmul.f32 %v2217, %v2310
        %v2327 = vmul.f32 %v2222, %v2310
        %v2328 = vmul.f32 %v2227, %v2310
        %v2329 = vmul.f32 %v2232, %v2310
        %v2330 = vmul.f32 %v2237, %v2310
        %v2331 = vmul.f32 %v2242, %v2310
        %v2332 = vmul.f32 %v2247, %v2310
        %v2333 = vmul.f32 %v2252, %v2310
        %v2334 = vmul.f32 %v2257, %v2310
        %v2335 = vmul.f32 %v2262, %v2310
        %v2336 = vmul.f32 %v2267, %v2310
        %v2337 = vmul.f32 %v2272, %v2310
        %v2338 = vmul.f32 %v2277, %v2310
        %v2339 = vmul.f32 %v2282, %v2310
        %v2340 = vmul.f32 %v2287, %v2310
        %v2341 = vmul.f32 %v2292, %v2310
        %v2342 = vmul.f32 %v2297, %v2310
        %v2343 = vmul.f32 %v2302, %v2310
        %v2344 = vld [vmem:[%s3] sm:$0x1]
        %v2346 = vlaneseq
        %v2347 = vshrl.u32 %v2346, 7
        %v2348 = vsub.s32 0, %v2347
        %v2349 = vrot.slane %v2344, %v2348
        %v2351 = vadd.f32 %v2312, %v2349
        %v2352 = vadd.f32 %v2313, %v2349
        %v2353 = vadd.f32 %v2314, %v2349
        %v2354 = vadd.f32 %v2315, %v2349
        %v2355 = vadd.f32 %v2316, %v2349
        %v2356 = vadd.f32 %v2317, %v2349
        %v2357 = vadd.f32 %v2318, %v2349
        %v2358 = vadd.f32 %v2319, %v2349
        %v2359 = vadd.f32 %v2320, %v2349
        %v2360 = vadd.f32 %v2321, %v2349
        %v2361 = vadd.f32 %v2322, %v2349
        %v2362 = vadd.f32 %v2323, %v2349
        %v2363 = vadd.f32 %v2324, %v2349
        %v2364 = vadd.f32 %v2325, %v2349
        %v2365 = vadd.f32 %v2326, %v2349
        %v2366 = vadd.f32 %v2327, %v2349
        %v2367 = vadd.f32 %v2328, %v2349
        %v2368 = vadd.f32 %v2329, %v2349
        %v2369 = vadd.f32 %v2330, %v2349
        %v2370 = vadd.f32 %v2331, %v2349
        %v2371 = vadd.f32 %v2332, %v2349
        %v2372 = vadd.f32 %v2333, %v2349
        %v2373 = vadd.f32 %v2334, %v2349
        %v2374 = vadd.f32 %v2335, %v2349
        %v2375 = vadd.f32 %v2336, %v2349
        %v2376 = vadd.f32 %v2337, %v2349
        %v2377 = vadd.f32 %v2338, %v2349
        %v2378 = vadd.f32 %v2339, %v2349
        %v2379 = vadd.f32 %v2340, %v2349
        %v2380 = vadd.f32 %v2341, %v2349
        %v2381 = vadd.f32 %v2342, %v2349
        %v2382 = vadd.f32 %v2343, %v2349
        %v2383 = vmax.f32 %v2351, 0.0
        %v2384 = vmax.f32 %v2352, 0.0
        %v2385 = vmax.f32 %v2353, 0.0
        %v2386 = vmax.f32 %v2354, 0.0
        %v2387 = vmax.f32 %v2355, 0.0
        %v2388 = vmax.f32 %v2356, 0.0
        %v2389 = vmax.f32 %v2357, 0.0
        %v2390 = vmax.f32 %v2358, 0.0
        %v2391 = vmax.f32 %v2359, 0.0
        %v2392 = vmax.f32 %v2360, 0.0
        %v2393 = vmax.f32 %v2361, 0.0
        %v2394 = vmax.f32 %v2362, 0.0
        %v2395 = vmax.f32 %v2363, 0.0
        %v2396 = vmax.f32 %v2364, 0.0
        %v2397 = vmax.f32 %v2365, 0.0
        %v2398 = vmax.f32 %v2366, 0.0
        %v2399 = vmax.f32 %v2367, 0.0
        %v2400 = vmax.f32 %v2368, 0.0
        %v2401 = vmax.f32 %v2369, 0.0
        %v2402 = vmax.f32 %v2370, 0.0
        %v2403 = vmax.f32 %v2371, 0.0
        %v2404 = vmax.f32 %v2372, 0.0
        %v2405 = vmax.f32 %v2373, 0.0
        %v2406 = vmax.f32 %v2374, 0.0
        %v2407 = vmax.f32 %v2375, 0.0
        %v2408 = vmax.f32 %v2376, 0.0
        %v2409 = vmax.f32 %v2377, 0.0
        %v2410 = vmax.f32 %v2378, 0.0
        %v2411 = vmax.f32 %v2379, 0.0
        %v2412 = vmax.f32 %v2380, 0.0
        %v2413 = vmax.f32 %v2381, 0.0
        %v2414 = vmax.f32 %v2382, 0.0
        %2415 = vst [vmem:[#allocation3] sm:$0xff] %v2383
        %2416 = vst [vmem:[#allocation3 + $0x8] sm:$0xff] %v2384
        %2417 = vst [vmem:[#allocation3 + $0x10] sm:$0xff] %v2385
        %2418 = vst [vmem:[#allocation3 + $0x18] sm:$0xff] %v2386
        %2419 = vst [vmem:[#allocation3 + $0x20] sm:$0xff] %v2387
        %2420 = vst [vmem:[#allocation3 + $0x28] sm:$0xff] %v2388
        %2421 = vst [vmem:[#allocation3 + $0x30] sm:$0xff] %v2389
        %2422 = vst [vmem:[#allocation3 + $0x38] sm:$0xff] %v2390
        %2423 = vst [vmem:[#allocation3 + $0x40] sm:$0xff] %v2391
        %2424 = vst [vmem:[#allocation3 + $0x48] sm:$0xff] %v2392
        %2425 = vst [vmem:[#allocation3 + $0x50] sm:$0xff] %v2393
        %2426 = vst [vmem:[#allocation3 + $0x58] sm:$0xff] %v2394
        %2427 = vst [vmem:[#allocation3 + $0x60] sm:$0xff] %v2395
        %2428 = vst [vmem:[#allocation3 + $0x68] sm:$0xff] %v2396
        %2429 = vst [vmem:[#allocation3 + $0x70] sm:$0xff] %v2397
        %2430 = vst [vmem:[#allocation3 + $0x78] sm:$0xff] %v2398
        %2431 = vst [vmem:[#allocation3 + $0x80] sm:$0xff] %v2399
        %2432 = vst [vmem:[#allocation3 + $0x88] sm:$0xff] %v2400
        %2433 = vst [vmem:[#allocation3 + $0x90] sm:$0xff] %v2401
        %2434 = vst [vmem:[#allocation3 + $0x98] sm:$0xff] %v2402
        %2435 = vst [vmem:[#allocation3 + $0xa0] sm:$0xff] %v2403
        %2436 = vst [vmem:[#allocation3 + $0xa8] sm:$0xff] %v2404
        %2437 = vst [vmem:[#allocation3 + $0xb0] sm:$0xff] %v2405
        %2438 = vst [vmem:[#allocation3 + $0xb8] sm:$0xff] %v2406
        %2439 = vst [vmem:[#allocation3 + $0xc0] sm:$0xff] %v2407
        %2440 = vst [vmem:[#allocation3 + $0xc8] sm:$0xff] %v2408
        %2441 = vst [vmem:[#allocation3 + $0xd0] sm:$0xff] %v2409
        %2442 = vst [vmem:[#allocation3 + $0xd8] sm:$0xff] %v2410
        %2443 = vst [vmem:[#allocation3 + $0xe0] sm:$0xff] %v2411
        %2444 = vst [vmem:[#allocation3 + $0xe8] sm:$0xff] %v2412
        %2445 = vst [vmem:[#allocation3 + $0xf0] sm:$0xff] %v2413
        %2446 = vst [vmem:[#allocation3 + $0xf8] sm:$0xff] %v2414
        %v2447 = vld [vmem:[#allocation3] sm:$0xff]
        %v2448 = vld [vmem:[#allocation3 + $0x8] sm:$0xff]
        %v2449 = vld [vmem:[#allocation3 + $0x10] sm:$0xff]
        %v2450 = vld [vmem:[#allocation3 + $0x18] sm:$0xff]
        %v2451 = vld [vmem:[#allocation3 + $0x20] sm:$0xff]
        %v2452 = vld [vmem:[#allocation3 + $0x28] sm:$0xff]
        %v2453 = vld [vmem:[#allocation3 + $0x30] sm:$0xff]
        %v2454 = vld [vmem:[#allocation3 + $0x38] sm:$0xff]
        %v2455 = vld [vmem:[#allocation3 + $0x40] sm:$0xff]
        %v2456 = vld [vmem:[#allocation3 + $0x48] sm:$0xff]
        %v2457 = vld [vmem:[#allocation3 + $0x50] sm:$0xff]
        %v2458 = vld [vmem:[#allocation3 + $0x58] sm:$0xff]
        %v2459 = vld [vmem:[#allocation3 + $0x60] sm:$0xff]
        %v2460 = vld [vmem:[#allocation3 + $0x68] sm:$0xff]
        %v2461 = vld [vmem:[#allocation3 + $0x70] sm:$0xff]
        %v2462 = vld [vmem:[#allocation3 + $0x78] sm:$0xff]
        %v2463 = vld [vmem:[#allocation3 + $0x80] sm:$0xff]
        %v2464 = vld [vmem:[#allocation3 + $0x88] sm:$0xff]
        %v2465 = vld [vmem:[#allocation3 + $0x90] sm:$0xff]
        %v2466 = vld [vmem:[#allocation3 + $0x98] sm:$0xff]
        %v2467 = vld [vmem:[#allocation3 + $0xa0] sm:$0xff]
        %v2468 = vld [vmem:[#allocation3 + $0xa8] sm:$0xff]
        %v2469 = vld [vmem:[#allocation3 + $0xb0] sm:$0xff]
        %v2470 = vld [vmem:[#allocation3 + $0xb8] sm:$0xff]
        %v2471 = vld [vmem:[#allocation3 + $0xc0] sm:$0xff]
        %v2472 = vld [vmem:[#allocation3 + $0xc8] sm:$0xff]
        %v2473 = vld [vmem:[#allocation3 + $0xd0] sm:$0xff]
        %v2474 = vld [vmem:[#allocation3 + $0xd8] sm:$0xff]
        %v2475 = vld [vmem:[#allocation3 + $0xe0] sm:$0xff]
        %v2476 = vld [vmem:[#allocation3 + $0xe8] sm:$0xff]
        %v2477 = vld [vmem:[#allocation3 + $0xf0] sm:$0xff]
        %v2478 = vld [vmem:[#allocation3 + $0xf8] sm:$0xff]
        %v2479 = vadd.f32 %v2447, %v2448
        %v2480 = vadd.f32 %v2479, %v2449
        %v2481 = vadd.f32 %v2480, %v2450
        %v2482 = vadd.f32 %v2481, %v2451
        %v2483 = vadd.f32 %v2482, %v2452
        %v2484 = vadd.f32 %v2483, %v2453
        %v2485 = vadd.f32 %v2484, %v2454
        %v2486 = vadd.f32 %v2485, %v2455
        %v2487 = vadd.f32 %v2486, %v2456
        %v2488 = vadd.f32 %v2487, %v2457
        %v2489 = vadd.f32 %v2488, %v2458
        %v2490 = vadd.f32 %v2489, %v2459
        %v2491 = vadd.f32 %v2490, %v2460
        %v2492 = vadd.f32 %v2491, %v2461
        %v2493 = vadd.f32 %v2492, %v2462
        %v2494 = vadd.f32 %v2493, %v2463
        %v2495 = vadd.f32 %v2494, %v2464
        %v2496 = vadd.f32 %v2495, %v2465
        %v2497 = vadd.f32 %v2496, %v2466
        %v2498 = vadd.f32 %v2497, %v2467
        %v2499 = vadd.f32 %v2498, %v2468
        %v2500 = vadd.f32 %v2499, %v2469
        %v2501 = vadd.f32 %v2500, %v2470
        %v2502 = vadd.f32 %v2501, %v2471
        %v2503 = vadd.f32 %v2502, %v2472
        %v2504 = vadd.f32 %v2503, %v2473
        %v2505 = vadd.f32 %v2504, %v2474
        %v2506 = vadd.f32 %v2505, %v2475
        %v2507 = vadd.f32 %v2506, %v2476
        %v2508 = vadd.f32 %v2507, %v2477
        %v2509 = vadd.f32 %v2508, %v2478
        %v2510 = vrot.slane %v2509, 4
        %v2511 = vadd.f32 %v2509, %v2510
        %v2512 = vrot.slane %v2511, 2
        %v2513 = vadd.f32 %v2511, %v2512
        %v2514 = vrot.slane %v2513, 1
        %v2515 = vadd.f32 %v2513, %v2514
        %v2516 = vmul.f32 %v2515, 0.00390625
        %v2517 = vld [vmem:[%s4] sm:$0xff]
        %v2518 = vld [vmem:[%s4 + $0x8] sm:$0xff]
        %v2519 = vld [vmem:[%s4 + $0x10] sm:$0xff]
        %v2520 = vld [vmem:[%s4 + $0x18] sm:$0xff]
        %v2521 = vld [vmem:[%s4 + $0x20] sm:$0xff]
        %v2522 = vld [vmem:[%s4 + $0x28] sm:$0xff]
        %v2523 = vld [vmem:[%s4 + $0x30] sm:$0xff]
        %v2524 = vld [vmem:[%s4 + $0x38] sm:$0xff]
        %v2525 = vld [vmem:[%s4 + $0x40] sm:$0xff]
        %v2526 = vld [vmem:[%s4 + $0x48] sm:$0xff]
        %v2527 = vld [vmem:[%s4 + $0x50] sm:$0xff]
        %v2528 = vld [vmem:[%s4 + $0x58] sm:$0xff]
        %v2529 = vld [vmem:[%s4 + $0x60] sm:$0xff]
        %v2530 = vld [vmem:[%s4 + $0x68] sm:$0xff]
        %v2531 = vld [vmem:[%s4 + $0x70] sm:$0xff]
        %v2532 = vld [vmem:[%s4 + $0x78] sm:$0xff]
        %2533 = vmatprep.subr.mxu0 0.0
        %2534 = vmatpush1.msra.mxu0 %v2532
        %2535 = vmatprep.subr.mxu0 0.0
        %2536 = vmatpush1.msra.mxu0 %v2531
        %2537 = vmatprep.subr.mxu0 0.0
        %2538 = vmatpush1.msra.mxu0 %v2530
        %2539 = vmatprep.subr.mxu0 0.0
        %2540 = vmatpush1.msra.mxu0 %v2529
        %2541 = vmatprep.subr.mxu0 0.0
        %2542 = vmatpush1.msra.mxu0 %v2528
        %2543 = vmatprep.subr.mxu0 0.0
        %2544 = vmatpush1.msra.mxu0 %v2527
        %2545 = vmatprep.subr.mxu0 0.0
        %2546 = vmatpush1.msra.mxu0 %v2526
        %2547 = vmatprep.subr.mxu0 0.0
        %2548 = vmatpush1.msra.mxu0 %v2525
        %2549 = vmatprep.subr.mxu0 0.0
        %2550 = vmatpush1.msra.mxu0 %v2524
        %2551 = vmatprep.subr.mxu0 0.0
        %2552 = vmatpush1.msra.mxu0 %v2523
        %2553 = vmatprep.subr.mxu0 0.0
        %2554 = vmatpush1.msra.mxu0 %v2522
        %2555 = vmatprep.subr.mxu0 0.0
        %2556 = vmatpush1.msra.mxu0 %v2521
        %2557 = vmatprep.subr.mxu0 0.0
        %2558 = vmatpush1.msra.mxu0 %v2520
        %2559 = vmatprep.subr.mxu0 0.0
        %2560 = vmatpush1.msra.mxu0 %v2519
        %2561 = vmatprep.subr.mxu0 0.0
        %2562 = vmatpush1.msra.mxu0 %v2518
        %2563 = vmatprep.subr.mxu0 0.0
        %2564 = vmatpush1.msra.mxu0 %v2517
        %2565 = vmatprep.subr.mxu0 0.0
        %2566 = vmatpush2.msra.mxu0 0.0
        %2567 = vmatprep.subr.mxu0 0.0
        %2568 = vmatpush2.msra.mxu0 0.0
        %2569 = vmatprep.subr.mxu0 0.0
        %2570 = vmatpush2.msra.mxu0 0.0
        %2571 = vmatprep.subr.mxu0 0.0
        %2572 = vmatpush2.msra.mxu0 0.0
        %2573 = vmatprep.subr.mxu0 0.0
        %2574 = vmatpush2.msra.mxu0 0.0
        %2575 = vmatprep.subr.mxu0 0.0
        %2576 = vmatpush2.msra.mxu0 0.0
        %2577 = vmatprep.subr.mxu0 0.0
        %2578 = vmatpush2.msra.mxu0 0.0
        %2579 = vmatprep.subr.mxu0 0.0
        %2580 = vmatpush2.msra.mxu0 0.0
        %2581 = vmatprep.subr.mxu0 0.0
        %2582 = vmatpush2.msra.mxu0 0.0
        %2583 = vmatprep.subr.mxu0 0.0
        %2584 = vmatpush2.msra.mxu0 0.0
        %2585 = vmatprep.subr.mxu0 0.0
        %2586 = vmatpush2.msra.mxu0 0.0
        %2587 = vmatprep.subr.mxu0 0.0
        %2588 = vmatpush2.msra.mxu0 0.0
        %2589 = vmatprep.subr.mxu0 0.0
        %2590 = vmatpush2.msra.mxu0 0.0
        %2591 = vmatprep.subr.mxu0 0.0
        %2592 = vmatpush2.msra.mxu0 0.0
        %2593 = vmatprep.subr.mxu0 0.0
        %2594 = vmatpush2.msra.mxu0 0.0
        %2595 = vmatprep.subr.mxu0 0.0
        %2596 = vmatpush2.msra.mxu0 0.0
        %2597 = vmatprep.mubr.f32.mxu0 0.0
        %2598 = vmatmul.mubr.f32.gmra.mxu0 %v2516
        %v2599 = vpop.f32.mrf.mxu0
        %v2600 = vadd.f32 0.0, %v2599
        %v2601 = vpop.f32.mrf.mxu0
        %2602 = vdwg.mxu0
        %v2603 = vld [vmem:[%s5] sm:$0x1]
        %v2604 = vmul.f32 %v2600, %v2603
        %v2605 = vld [vmem:[%s6] sm:$0x1]
        %v2606 = vadd.f32 %v2604, %v2605
        %v2607 = vxor.u32 %v2606, 2147483648
        %v2608 = vmul.f32 %v2607, 1.442695
        %v2609 = vpow.pop %v2608
        %v2610 = vadd.f32 %v2609, 1.0
        %v2611 = vrcp.pop %v2610
        %v2612 = vmul.f32 1.0, %v2611
        %v2613 = vlaneseq
        %v2614 = vshrl.u32 %v2613, 7
        %v2615 = vsub.s32 0, %v2614
        %v2616 = vrot.slane %v2612, %v2615
        %v2617 = vmul.f32 %v2447, %v2616
        %v2618 = vmul.f32 %v2448, %v2616
        %v2619 = vmul.f32 %v2449, %v2616
        %v2620 = vmul.f32 %v2450, %v2616
        %v2621 = vmul.f32 %v2451, %v2616
        %v2622 = vmul.f32 %v2452, %v2616
        %v2623 = vmul.f32 %v2453, %v2616
        %v2624 = vmul.f32 %v2454, %v2616
        %v2625 = vmul.f32 %v2455, %v2616
        %v2626 = vmul.f32 %v2456, %v2616
        %v2627 = vmul.f32 %v2457, %v2616
        %v2628 = vmul.f32 %v2458, %v2616
        %v2629 = vmul.f32 %v2459, %v2616
        %v2630 = vmul.f32 %v2460, %v2616
        %v2631 = vmul.f32 %v2461, %v2616
        %v2632 = vmul.f32 %v2462, %v2616
        %v2633 = vmul.f32 %v2463, %v2616
        %v2634 = vmul.f32 %v2464, %v2616
        %v2635 = vmul.f32 %v2465, %v2616
        %v2636 = vmul.f32 %v2466, %v2616
        %v2637 = vmul.f32 %v2467, %v2616
        %v2638 = vmul.f32 %v2468, %v2616
        %v2639 = vmul.f32 %v2469, %v2616
        %v2640 = vmul.f32 %v2470, %v2616
        %v2641 = vmul.f32 %v2471, %v2616
        %v2642 = vmul.f32 %v2472, %v2616
        %v2643 = vmul.f32 %v2473, %v2616
        %v2644 = vmul.f32 %v2474, %v2616
        %v2645 = vmul.f32 %v2475, %v2616
        %v2646 = vmul.f32 %v2476, %v2616
        %v2647 = vmul.f32 %v2477, %v2616
        %v2648 = vmul.f32 %v2478, %v2616
        %2649 = vst [vmem:[%s271] sm:$0xff] %v2617
        %2650 = vst [vmem:[%s271 + $0x8] sm:$0xff] %v2618
        %2651 = vst [vmem:[%s271 + $0x10] sm:$0xff] %v2619
        %2652 = vst [vmem:[%s271 + $0x18] sm:$0xff] %v2620
        %2653 = vst [vmem:[%s271 + $0x20] sm:$0xff] %v2621
        %2654 = vst [vmem:[%s271 + $0x28] sm:$0xff] %v2622
        %2655 = vst [vmem:[%s271 + $0x30] sm:$0xff] %v2623
        %2656 = vst [vmem:[%s271 + $0x38] sm:$0xff] %v2624
        %2657 = vst [vmem:[%s271 + $0x40] sm:$0xff] %v2625
        %2658 = vst [vmem:[%s271 + $0x48] sm:$0xff] %v2626
        %2659 = vst [vmem:[%s271 + $0x50] sm:$0xff] %v2627
        %2660 = vst [vmem:[%s271 + $0x58] sm:$0xff] %v2628
        %2661 = vst [vmem:[%s271 + $0x60] sm:$0xff] %v2629
        %2662 = vst [vmem:[%s271 + $0x68] sm:$0xff] %v2630
        %2663 = vst [vmem:[%s271 + $0x70] sm:$0xff] %v2631
        %2664 = vst [vmem:[%s271 + $0x78] sm:$0xff] %v2632
        %2665 = vst [vmem:[%s271 + $0x80] sm:$0xff] %v2633
        %2666 = vst [vmem:[%s271 + $0x88] sm:$0xff] %v2634
        %2667 = vst [vmem:[%s271 + $0x90] sm:$0xff] %v2635
        %2668 = vst [vmem:[%s271 + $0x98] sm:$0xff] %v2636
        %2669 = vst [vmem:[%s271 + $0xa0] sm:$0xff] %v2637
        %2670 = vst [vmem:[%s271 + $0xa8] sm:$0xff] %v2638
        %2671 = vst [vmem:[%s271 + $0xb0] sm:$0xff] %v2639
        %2672 = vst [vmem:[%s271 + $0xb8] sm:$0xff] %v2640
        %2673 = vst [vmem:[%s271 + $0xc0] sm:$0xff] %v2641
        %2674 = vst [vmem:[%s271 + $0xc8] sm:$0xff] %v2642
        %2675 = vst [vmem:[%s271 + $0xd0] sm:$0xff] %v2643
        %2676 = vst [vmem:[%s271 + $0xd8] sm:$0xff] %v2644
        %2677 = vst [vmem:[%s271 + $0xe0] sm:$0xff] %v2645
        %2678 = vst [vmem:[%s271 + $0xe8] sm:$0xff] %v2646
        %2679 = vst [vmem:[%s271 + $0xf0] sm:$0xff] %v2647
        %2680 = vst [vmem:[%s271 + $0xf8] sm:$0xff] %v2648
        %s2681 = sand.u32 %s181, 1
        %s2682 = scalar_lea.sflag [#allocation5], %s2681
        %s2683 = sand.u32 %s181, 1
        %s2684 = smul.addr %s2683, 256
        %s2685 = scalar_lea.vmem [#allocation4], %s2684
        // Predicated region
        $region49: #{tpu_custom_call.1} parent=47 // pred_check
          %p2686 = pneg %p191
        $region50: #{tpu_custom_call.1} parent=47 // pred_check_branch
          %2688 = sbr.rel (%p2686) target = $region52
        $region51: #{tpu_custom_call.1} parent=47 // pred_region
          %s2690 = ssub.s32 4096, 4096
          %2691 = vsyncadd %s2682, %s2690
          %s2692 = smul.addr %s21, 32
          %s2693 = smul.addr %s2692, 128
          %s2694 = scalar_lea.hbm %s7, %s2693
          %s2695 = sshll.u32 %s2685, 4
          %s2696 = int_to_ptr.vmem [resolvable:$true] %s2695
          %2701 = dma.vmem_to_hbm [thread:$0]  %s2696, 4096, %s2694, %s2682, 128, 128, 8
        $region52: #{tpu_custom_call.1} parent=47 // pred_fallthru
          _
      $region48: #{tpu_custom_call.1} parent=5 // pred_fallthru
        _
      %p2702 = scmp.le.s32.totalorder 2, %s16
      // Predicated region
      $region53: #{tpu_custom_call.1} parent=5 // pred_check
        %p2703 = pneg %p2702
      $region54: #{tpu_custom_call.1} parent=5 // pred_check_branch
        %2705 = sbr.rel (%p2703) target = $region56
      $region55: #{tpu_custom_call.1} parent=5 // pred_region
        %s2706 = ssub.s32 %s16, 2
        // Predicated region
        $region57: #{tpu_custom_call.1} parent=55 // pred_check
          %p2707 = pneg %p197
        $region58: #{tpu_custom_call.1} parent=55 // pred_check_branch
          %2709 = sbr.rel (%p2707) target = $region60
        $region59: #{tpu_custom_call.1} parent=55 // pred_region
          %s2710 = sand.u32 %s182, 1
          %s2711 = scalar_lea.sflag [#allocation5], %s2710
          %s2712 = sand.u32 %s182, 1
          %s2713 = smul.addr %s2712, 256
          %s2714 = scalar_lea.vmem [#allocation4], %s2713
          %2715 = dma.done %s2711, 4096
        $region60: #{tpu_custom_call.1} parent=55 // pred_fallthru
          _
      $region56: #{tpu_custom_call.1} parent=5 // pred_fallthru
        _
    $region6: #{tpu_custom_call.1} parent=1 // loop_footer
      %s20 = sadd.s32 1, %s16
    $region7: #{tpu_custom_call.1} parent=1 // loop_footer_branch
      %15 = sbr.rel target = $region3
    $region8: #{tpu_custom_call.1} parent=1 // loop_exit
      _
    %2716 = vsyncpa [#allocation5], 1
    %s2717 = scalar_lea.sflag [#allocation5], 1
    %2718 = vsyncpa %s2717, 1

</llo_original>
